<compile_context>
chip_gen: v5e
topology: v5e:2x2
jax: 0.10.0
libtpu: 0.0.40
codegen_flags: <defaults>
</compile_context>

<pallas_src>
import functools
import math

import jax
import jax.numpy as jnp
from jax.experimental import pallas as pl
from jax.experimental.pallas import tpu as pltpu


def _round_up(x, mult):
    return ((x + mult - 1) // mult) * mult


def _pick_tile(requested, total, want_two_tiles):
    """Pick a 128-aligned tile size; optionally force >= 2 tiles (megacore)."""
    t = _round_up(min(requested, total), 128)
    if want_two_tiles and total >= 256 and total // t < 2:
        t = _round_up(-(-total // 2), 128)
    return t


def _project_kernel(featsT_ref, kidx_ref, kern_ref, yT_ref):
    # featsT_ref: (C_in, Nt)              f32   point features, feature-major
    # kidx_ref:   (1, Nt)                 int32 per-point kernel index
    # kern_ref:   (n_kernels*C_out, C_in) f32   stacked transposed kernels
    # yT_ref:     (C_out + 1, Nt)         bf16  projected feats + ones row
    feats_t = featsT_ref[...]
    n_tile = feats_t.shape[1]
    c_out = yT_ref.shape[0] - 1
    n_kernels = kern_ref.shape[0] // c_out

    # One stacked MXU matmul: every kernel applied to every point (128 output
    # rows fill the MXU sublane dim instead of n_kernels tiny matmuls).
    y_all = jnp.dot(kern_ref[...], feats_t,
                    preferred_element_type=jnp.float32)      # (K*C_out, Nt)

    # Per-point kernel selection: n_kernels cheap masked adds (VPU).
    kidx = kidx_ref[...]                                      # (1, Nt)
    y = jnp.zeros((c_out, n_tile), jnp.float32)
    for k in range(n_kernels):
        y = y + jnp.where(kidx == k,
                          y_all[k * c_out:(k + 1) * c_out, :], 0.0)

    yT_ref[0:c_out, :] = y.astype(yT_ref.dtype)
    # Ones row: the scatter matmul then emits per-cell counts for free.
    yT_ref[c_out:c_out + 1, :] = jnp.ones((1, n_tile), yT_ref.dtype)


def _scatter_kernel(yT_ref, cell_ref, biasT_ref, sums_ref, cnt_ref):
    # yT_ref:    (C_out + 1, Nt) bf16  projected feats (+ ones row)
    # cell_ref:  (Nt, 1)         int32 collapsed BEV cell id (-1 = dropped/pad)
    # biasT_ref: (C_out, 1)      f32
    # sums_ref:  (C_out, Mt)     f32   output / accumulator (lane-dense)
    # cnt_ref:   (1, Mt)         f32   output / accumulator (lane-dense)
    n_step = pl.program_id(1)

    @pl.when(n_step == 0)
    def _init():
        sums_ref[...] = jnp.zeros_like(sums_ref)
        cnt_ref[...] = jnp.zeros_like(cnt_ref)

    c_out, m_tile = sums_ref.shape

    # One-hot scatter matrix: tiny (1, Mt) lane iota (+ tile offset) against
    # the (Nt, 1) cell ids; padding/dropped points (cell = -1) match nothing.
    # 0/1 values are exact in bf16.
    m_off = pl.program_id(0) * m_tile
    col_ids = jax.lax.broadcasted_iota(jnp.int32, (1, m_tile), 1) + m_off
    onehot = (cell_ref[...] == col_ids).astype(yT_ref.dtype)  # (Nt, Mt)

    # Scatter-add on the MXU: (C_out+1, Nt) @ (Nt, Mt); row C_out = counts.
    acc = jnp.dot(yT_ref[...], onehot, preferred_element_type=jnp.float32)
    sums_ref[...] += acc[0:c_out, :]
    cnt_ref[...] += acc[c_out:c_out + 1, :]

    @pl.when(n_step == pl.num_programs(1) - 1)
    def _finalize():
        # torch adds the bias per point before the scatter-sum, so each cell
        # accumulates count * bias.
        sums_ref[...] += cnt_ref[...] * biasT_ref[...]


@functools.partial(
    jax.jit,
    static_argnames=("dim", "sizes", "tensor_stride", "stride",
                     "m_tile", "n_tile", "scatter_dtype"))
def to_bev_convolution(coords, feats, kernel, bias=None, *,
                       dim=1, sizes=(16, 16, 16, 2),
                       tensor_stride=1, stride=1,
                       m_tile=512, n_tile=2048,
                       scatter_dtype=jnp.bfloat16):
    """Pallas implementation of ToBEVConvolution.forward.

    Returns:
      sums   (M, C_out) f32 -- per-BEV-cell summed projected features.
      counts (M,)       f32 -- points per cell (occupied cells = torch output rows).
    """
    n, c_in = feats.shape
    n_kernels, _, c_out = kernel.shape

    # --- per-point kernel index (coords[:, dim] // tensor_stride) ---
    kidx = (coords[:, dim] // tensor_stride).astype(jnp.int32)

    # --- collapse axis `dim` (+ optional stride quantization) ---
    ratio = tensor_stride * stride
    coords_c = coords.at[:, dim].set(0)
    if stride > 1:
        spatial = (coords_c[:, :3] // ratio) * ratio
        coords_c = coords_c.at[:, :3].set(spatial)

    red_sizes = tuple(1 if i == dim else s for i, s in enumerate(sizes))
    m = math.prod(red_sizes)
    strides_l = []
    a = 1
    for s in reversed(red_sizes):
        strides_l.append(a)
        a *= s
    strides_v = jnp.asarray(list(reversed(strides_l)), dtype=jnp.int32)  # (4,)
    cell = jnp.sum(coords_c * strides_v[None, :], axis=1).astype(jnp.int32)
    # Points with an out-of-range cell OR kernel index are dropped entirely
    # (torch would raise); dropping keeps sums/counts/bias mutually consistent.
    valid = (cell >= 0) & (cell < m) & (kidx >= 0) & (kidx < n_kernels)
    cell = jnp.where(valid, cell, -1)

    # --- static tile / padding plumbing (lane-dense, 128-aligned tiles) ---
    m_pad = _round_up(m, 128)
    mt = _pick_tile(m_tile, m_pad, want_two_tiles=True)   # >=2 m tiles: v7x megacore
    m_pad = _round_up(m_pad, mt)
    n_pad = _round_up(n, 128)
    nt = _pick_tile(n_tile, n_pad, want_two_tiles=True)
    n_pad = _round_up(n_pad, nt)

    featsT = jnp.zeros((c_in, n_pad), jnp.float32)
    featsT = featsT.at[:, :n].set(feats.astype(jnp.float32).T)
    kidx_p = jnp.zeros((1, n_pad), jnp.int32).at[0, :n].set(kidx)
    cell_p = jnp.full((n_pad, 1), -1, jnp.int32).at[:n, 0].set(cell)
    # Stacked, transposed kernel: row k*C_out + o  ==  kernel[k, :, o].
    kern_st = jnp.transpose(kernel.astype(jnp.float32),
                            (0, 2, 1)).reshape(n_kernels * c_out, c_in)
    if bias is None:
        biasT = jnp.zeros((c_out, 1), jnp.float32)
    else:
        biasT = jnp.asarray(bias, jnp.float32).reshape(1, c_out).T   # (C_out, 1)

    itemsize = jnp.dtype(scatter_dtype).itemsize

    # ---------------- kernel A: per-point projection over N -----------------
    grid_p = (n_pad // nt,)
    proj_flops = 2 * n_kernels * c_out * c_in * n_pad
    proj_bytes = ((c_in + 1) * n_pad + n_kernels * c_in * c_out) * 4 \
        + (c_out + 1) * n_pad * itemsize
    yT = pl.pallas_call(
        _project_kernel,
        grid=grid_p,
        in_specs=[
            pl.BlockSpec((c_in, nt), lambda i: (0, i)),
            pl.BlockSpec((1, nt), lambda i: (0, i)),
            pl.BlockSpec((n_kernels * c_out, c_in), lambda i: (0, 0)),
        ],
        out_specs=pl.BlockSpec((c_out + 1, nt), lambda i: (0, i)),
        out_shape=jax.ShapeDtypeStruct((c_out + 1, n_pad), scatter_dtype),
        compiler_params=pltpu.CompilerParams(
            dimension_semantics=("parallel",),
            vmem_limit_bytes=32 * 1024 * 1024),
        cost_estimate=pl.CostEstimate(
            flops=proj_flops, transcendentals=0, bytes_accessed=proj_bytes),
    )(featsT, kidx_p, kern_st)

    # ---------------- kernel B: one-hot scatter over (M, N) -----------------
    grid_s = (m_pad // mt, n_pad // nt)
    scat_flops = 2 * (c_out + 1) * n_pad * m_pad
    scat_bytes = grid_s[0] * n_pad * ((c_out + 1) * itemsize + 4) \
        + (c_out + 1) * m_pad * 4 + c_out * 4
    sums_t, counts = pl.pallas_call(
        _scatter_kernel,
        grid=grid_s,
        in_specs=[
            pl.BlockSpec((c_out + 1, nt), lambda i, k: (0, k)),
            pl.BlockSpec((nt, 1), lambda i, k: (k, 0)),
            pl.BlockSpec((c_out, 1), lambda i, k: (0, 0)),
        ],
        out_specs=(
            pl.BlockSpec((c_out, mt), lambda i, k: (0, i)),
            pl.BlockSpec((1, mt), lambda i, k: (0, i)),
        ),
        out_shape=(
            jax.ShapeDtypeStruct((c_out, m_pad), jnp.float32),
            jax.ShapeDtypeStruct((1, m_pad), jnp.float32),
        ),
        compiler_params=pltpu.CompilerParams(
            dimension_semantics=("parallel", "arbitrary"),
            vmem_limit_bytes=32 * 1024 * 1024),
        cost_estimate=pl.CostEstimate(
            flops=scat_flops, transcendentals=0, bytes_accessed=scat_bytes),
    )(yT, cell_p, biasT)

    # TODO(synk): dynamic extraction of the unique occupied coordinates (torch
    # sparse coalesce / .indices()) has no static-shape Pallas equivalent;
    # occupied cells are counts > 0 in the dense grid.
    sums = sums_t[:, :m].T          # (M, C_out) -- wrapper-side layout plumbing
    cnts = counts[0, :m]            # (M,)
    return sums, cnts


if __name__ == "__main__":
    key = jax.random.PRNGKey(0)

    N = 1000
    X, Y, Z, B = 16, 16, 16, 2
    DIM = 1
    C_IN, C_OUT = 16, 8
    TENSOR_STRIDE = 1
    STRIDE = 1
    N_KERNELS = Y // TENSOR_STRIDE

    kx, ky, kz, kb, kf, kw, kbias = jax.random.split(key, 7)
    coords = jnp.stack(
        [
            jax.random.randint(kx, (N,), 0, X),
            jax.random.randint(ky, (N,), 0, Y),
            jax.random.randint(kz, (N,), 0, Z),
            jax.random.randint(kb, (N,), 0, B),
        ],
        axis=1,
    ).astype(jnp.int32)
    feats = jax.random.normal(kf, (N, C_IN), dtype=jnp.float32)
    std = 1.0 / math.sqrt(C_IN)
    kernel = jax.random.uniform(kw, (N_KERNELS, C_IN, C_OUT),
                                dtype=jnp.float32, minval=-std, maxval=std)
    bias = 0.1 * jax.random.normal(kbias, (1, C_OUT), dtype=jnp.float32)

    sums, counts = to_bev_convolution(
        coords, feats, kernel, bias,
        dim=DIM, sizes=(X, Y, Z, B),
        tensor_stride=TENSOR_STRIDE, stride=STRIDE)
    sums = jax.block_until_ready(sums)
    counts = jax.block_until_ready(counts)

    # --- pure-JAX reference of the torch forward ---
    kidx = coords[:, DIM] // TENSOR_STRIDE
    ksel = kernel[kidx]                                     # (N, C_in, C_out)
    y = jnp.einsum('nc,nco->no', feats, ksel,
                   precision=jax.lax.Precision.HIGHEST)     # (N, C_out)
    coords_c = coords.at[:, DIM].set(0)
    red_sizes = tuple(1 if i == DIM else s for i, s in enumerate((X, Y, Z, B)))
    M = math.prod(red_sizes)
    strides_l = []
    a = 1
    for s in reversed(red_sizes):
        strides_l.append(a)
        a *= s
    strides_v = jnp.asarray(list(reversed(strides_l)), dtype=jnp.int32)
    ref_cell = jnp.sum(coords_c * strides_v[None, :], axis=1)
    ref_cnt = jnp.zeros((M,), jnp.float32).at[ref_cell].add(1.0)
    bias_row = bias.reshape(1, C_OUT)
    # Exact f32 reference (torch semantics).
    ref_sum_f32 = (jnp.zeros((M, C_OUT), jnp.float32).at[ref_cell].add(y)
                   + ref_cnt[:, None] * bias_row)
    # Numerics-matched reference: the kernel streams y through bf16 into the
    # scatter matmul (accumulation stays f32).
    y_bf = y.astype(jnp.bfloat16).astype(jnp.float32)
    ref_sum_bf = (jnp.zeros((M, C_OUT), jnp.float32).at[ref_cell].add(y_bf)
                  + ref_cnt[:, None] * bias_row)

    assert sums.shape == (M, C_OUT) and counts.shape == (M,)
    assert jnp.allclose(counts, ref_cnt), "counts mismatch"
    assert int(jnp.sum(counts)) == N
    assert jnp.allclose(sums, ref_sum_bf, atol=5e-2, rtol=2e-2), \
        "sums mismatch (bf16-matched reference)"
    assert jnp.allclose(sums, ref_sum_f32, atol=1e-1, rtol=5e-2), \
        "sums mismatch (f32 reference)"

    print("KERNEL_OK")
</pallas_src>

<mosaic_0001>
module attributes {stable_mosaic.version = 11 : i64} {
  func.func @_scatter_kernel(%arg0: i32, %arg1: i32, %arg2: memref<9x512xbf16, #tpu.memory_space<vmem>>, %arg3: memref<512x1xi32, #tpu.memory_space<vmem>>, %arg4: memref<8x1xf32, #tpu.memory_space<vmem>>, %arg5: memref<8x256xf32, #tpu.memory_space<vmem>>, %arg6: memref<1x256xf32, #tpu.memory_space<vmem>>) attributes {dimension_semantics = [#tpu.dimension_semantics<parallel>, #tpu.dimension_semantics<arbitrary>], iteration_bounds = array<i64: 2, 2>, scalar_prefetch = 0 : i64, scratch_operands = 0 : i64, tpu.core_type = #tpu.core_type<tc>, window_params = [{transform_indices = @transform_0, window_bounds = array<i64: 9, 512>}, {transform_indices = @transform_1, window_bounds = array<i64: 512, 1>}, {pipeline_mode = #tpu.pipeline_mode<synchronous>, transform_indices = @transform_2, window_bounds = array<i64: 8, 1>}, {transform_indices = @transform_3, window_bounds = array<i64: 8, 256>}, {transform_indices = @transform_4, window_bounds = array<i64: 1, 256>}]} {
    %c0_i32 = arith.constant 0 : i32
    %0 = arith.cmpi eq, %arg1, %c0_i32 : i32
    %1 = arith.extui %0 : i1 to i32
    %c0_i32_0 = arith.constant 0 : i32
    %2 = arith.cmpi ne, %1, %c0_i32_0 : i32
    scf.if %2 {
      %cst_13 = arith.constant 0.000000e+00 : f32
      %27 = vector.broadcast %cst_13 : f32 to vector<8x256xf32>
      %c0_14 = arith.constant 0 : index
      %c0_15 = arith.constant 0 : index
      %28 = vector.load %arg5[%c0_14, %c0_15] : memref<8x256xf32, #tpu.memory_space<vmem>>, vector<8x256xf32>
      tpu.vector_store %arg5[%c0_14, %c0_15], %27 {strides = array<i32>} : memref<8x256xf32, #tpu.memory_space<vmem>>, vector<8x256xf32>,
      %cst_16 = arith.constant 0.000000e+00 : f32
      %29 = vector.broadcast %cst_16 : f32 to vector<1x256xf32>
      %c0_17 = arith.constant 0 : index
      %c0_18 = arith.constant 0 : index
      %30 = vector.load %arg6[%c0_17, %c0_18] : memref<1x256xf32, #tpu.memory_space<vmem>>, vector<1x256xf32>
      tpu.vector_store %arg6[%c0_17, %c0_18], %29 {strides = array<i32>} : memref<1x256xf32, #tpu.memory_space<vmem>>, vector<1x256xf32>,
    } else {
    }
    %c256_i32 = arith.constant 256 : i32
    %3 = arith.muli %arg0, %c256_i32 : i32
    %4 = tpu.iota {dimensions = array<i32: 1>} : vector<1x256xi32>
    %5 = vector.broadcast %3 : i32 to vector<1x256xi32>
    %6 = arith.addi %4, %5 : vector<1x256xi32>
    %c0 = arith.constant 0 : index
    %c0_1 = arith.constant 0 : index
    %7 = vector.load %arg3[%c0, %c0_1] : memref<512x1xi32, #tpu.memory_space<vmem>>, vector<512x1xi32>
    %8 = vector.broadcast %7 : vector<512x1xi32> to vector<512x256xi32>
    %9 = vector.broadcast %6 : vector<1x256xi32> to vector<512x256xi32>
    %10 = arith.cmpi eq, %8, %9 : vector<512x256xi32>
    %11 = arith.extui %10 : vector<512x256xi1> to vector<512x256xi32>
    %12 = arith.sitofp %11 : vector<512x256xi32> to vector<512x256xf32>
    %13 = arith.truncf %12 : vector<512x256xf32> to vector<512x256xbf16>
    %c0_2 = arith.constant 0 : index
    %c0_3 = arith.constant 0 : index
    %14 = vector.load %arg2[%c0_2, %c0_3] : memref<9x512xbf16, #tpu.memory_space<vmem>>, vector<9x512xbf16>
    %cst = arith.constant dense<0.000000e+00> : vector<9x256xf32>
    %15 = tpu.matmul %14, %13, %cst {dimension_numbers = #tpu.dot_dimension_numbers<[1], [0], [0], [1], [0, 0, 1, 1], [], []>} : vector<9x512xbf16>, vector<512x256xbf16>, vector<9x256xf32> -> vector<9x256xf32>
    %c0_4 = arith.constant 0 : index
    %c0_5 = arith.constant 0 : index
    %16 = vector.load %arg5[%c0_4, %c0_5] : memref<8x256xf32, #tpu.memory_space<vmem>>, vector<8x256xf32>
    %17 = vector.extract_strided_slice %15 {offsets = [0, 0], sizes = [8, 256], strides = [1, 1]} : vector<9x256xf32> to vector<8x256xf32>
    %18 = arith.addf %16, %17 : vector<8x256xf32>
    %c0_6 = arith.constant 0 : index
    %c0_7 = arith.constant 0 : index
    %19 = vector.load %arg5[%c0_6, %c0_7] : memref<8x256xf32, #tpu.memory_space<vmem>>, vector<8x256xf32>
    tpu.vector_store %arg5[%c0_6, %c0_7], %18 {strides = array<i32>} : memref<8x256xf32, #tpu.memory_space<vmem>>, vector<8x256xf32>,
    %c0_8 = arith.constant 0 : index
    %c0_9 = arith.constant 0 : index
    %20 = vector.load %arg6[%c0_8, %c0_9] : memref<1x256xf32, #tpu.memory_space<vmem>>, vector<1x256xf32>
    %21 = vector.extract_strided_slice %15 {offsets = [8, 0], sizes = [1, 256], strides = [1, 1]} : vector<9x256xf32> to vector<1x256xf32>
    %22 = arith.addf %20, %21 : vector<1x256xf32>
    %c0_10 = arith.constant 0 : index
    %c0_11 = arith.constant 0 : index
    %23 = vector.load %arg6[%c0_10, %c0_11] : memref<1x256xf32, #tpu.memory_space<vmem>>, vector<1x256xf32>
    tpu.vector_store %arg6[%c0_10, %c0_11], %22 {strides = array<i32>} : memref<1x256xf32, #tpu.memory_space<vmem>>, vector<1x256xf32>,
    %c1_i32 = arith.constant 1 : i32
    %24 = arith.cmpi eq, %arg1, %c1_i32 : i32
    %25 = arith.extui %24 : i1 to i32
    %c0_i32_12 = arith.constant 0 : i32
    %26 = arith.cmpi ne, %25, %c0_i32_12 : i32
    scf.if %26 {
      %c0_13 = arith.constant 0 : index
      %c0_14 = arith.constant 0 : index
      %27 = vector.load %arg5[%c0_13, %c0_14] : memref<8x256xf32, #tpu.memory_space<vmem>>, vector<8x256xf32>
      %c0_15 = arith.constant 0 : index
      %c0_16 = arith.constant 0 : index
      %28 = vector.load %arg6[%c0_15, %c0_16] : memref<1x256xf32, #tpu.memory_space<vmem>>, vector<1x256xf32>
      %c0_17 = arith.constant 0 : index
      %c0_18 = arith.constant 0 : index
      %29 = vector.load %arg4[%c0_17, %c0_18] : memref<8x1xf32, #tpu.memory_space<vmem>>, vector<8x1xf32>
      %30 = vector.broadcast %28 : vector<1x256xf32> to vector<8x256xf32>
      %31 = vector.broadcast %29 : vector<8x1xf32> to vector<8x256xf32>
      %32 = arith.mulf %30, %31 : vector<8x256xf32>
      %33 = arith.addf %27, %32 : vector<8x256xf32>
      %c0_19 = arith.constant 0 : index
      %c0_20 = arith.constant 0 : index
      %34 = vector.load %arg5[%c0_19, %c0_20] : memref<8x256xf32, #tpu.memory_space<vmem>>, vector<8x256xf32>
      tpu.vector_store %arg5[%c0_19, %c0_20], %33 {strides = array<i32>} : memref<8x256xf32, #tpu.memory_space<vmem>>, vector<8x256xf32>,
    } else {
    }
    return
  }
  func.func @transform_0(%arg0: i32, %arg1: i32) -> (i32, i32) {
    %c0_i32 = arith.constant 0 : i32
    %c0_i32_0 = arith.constant 0 : i32
    return %c0_i32, %arg1 : i32, i32
  }
  func.func @transform_1(%arg0: i32, %arg1: i32) -> (i32, i32) {
    %c0_i32 = arith.constant 0 : i32
    %c0_i32_0 = arith.constant 0 : i32
    return %arg1, %c0_i32 : i32, i32
  }
  func.func @transform_2(%arg0: i32, %arg1: i32) -> (i32, i32) {
    %c0_i32 = arith.constant 0 : i32
    %c0_i32_0 = arith.constant 0 : i32
    %c0_i32_1 = arith.constant 0 : i32
    return %c0_i32, %c0_i32_0 : i32, i32
  }
  func.func @transform_3(%arg0: i32, %arg1: i32) -> (i32, i32) {
    %c0_i32 = arith.constant 0 : i32
    %c0_i32_0 = arith.constant 0 : i32
    return %c0_i32, %arg0 : i32, i32
  }
  func.func @transform_4(%arg0: i32, %arg1: i32) -> (i32, i32) {
    %c0_i32 = arith.constant 0 : i32
    %c0_i32_0 = arith.constant 0 : i32
    return %c0_i32, %arg0 : i32, i32
  }
}

module attributes {stable_mosaic.version = 11 : i64} {
  func.func @_project_kernel(%arg0: i32, %arg1: memref<16x512xf32, #tpu.memory_space<vmem>>, %arg2: memref<1x512xi32, #tpu.memory_space<vmem>>, %arg3: memref<128x16xf32, #tpu.memory_space<vmem>>, %arg4: memref<9x512xbf16, #tpu.memory_space<vmem>>) attributes {dimension_semantics = [#tpu.dimension_semantics<parallel>], iteration_bounds = array<i64: 2>, scalar_prefetch = 0 : i64, scratch_operands = 0 : i64, tpu.core_type = #tpu.core_type<tc>, window_params = [{transform_indices = @transform_0, window_bounds = array<i64: 16, 512>}, {transform_indices = @transform_1, window_bounds = array<i64: 1, 512>}, {pipeline_mode = #tpu.pipeline_mode<synchronous>, transform_indices = @transform_2, window_bounds = array<i64: 128, 16>}, {transform_indices = @transform_3, window_bounds = array<i64: 9, 512>}]} {
    %c0 = arith.constant 0 : index
    %c0_0 = arith.constant 0 : index
    %0 = vector.load %arg1[%c0, %c0_0] : memref<16x512xf32, #tpu.memory_space<vmem>>, vector<16x512xf32>
    %c0_1 = arith.constant 0 : index
    %c0_2 = arith.constant 0 : index
    %1 = vector.load %arg3[%c0_1, %c0_2] : memref<128x16xf32, #tpu.memory_space<vmem>>, vector<128x16xf32>
    %cst = arith.constant dense<0.000000e+00> : vector<128x512xf32>
    %2 = tpu.matmul %1, %0, %cst {dimension_numbers = #tpu.dot_dimension_numbers<[1], [0], [0], [1], [0, 0, 1, 1], [], []>} : vector<128x16xf32>, vector<16x512xf32>, vector<128x512xf32> -> vector<128x512xf32>
    %c0_3 = arith.constant 0 : index
    %c0_4 = arith.constant 0 : index
    %3 = vector.load %arg2[%c0_3, %c0_4] : memref<1x512xi32, #tpu.memory_space<vmem>>, vector<1x512xi32>
    %cst_5 = arith.constant 0.000000e+00 : f32
    %4 = vector.broadcast %cst_5 : f32 to vector<8x512xf32>
    %c0_i32 = arith.constant 0 : i32
    %5 = vector.broadcast %c0_i32 : i32 to vector<1x512xi32>
    %6 = arith.cmpi eq, %3, %5 : vector<1x512xi32>
    %7 = vector.extract_strided_slice %2 {offsets = [0, 0], sizes = [8, 512], strides = [1, 1]} : vector<128x512xf32> to vector<8x512xf32>
    %cst_6 = arith.constant 0.000000e+00 : f32
    %8 = vector.shape_cast %6 : vector<1x512xi1> to vector<1x512xi1>
    %9 = vector.broadcast %8 : vector<1x512xi1> to vector<8x512xi1>
    %10 = vector.broadcast %cst_6 : f32 to vector<8x512xf32>
    %11 = arith.select %9, %7, %10 : vector<8x512xi1>, vector<8x512xf32>
    %12 = arith.addf %4, %11 : vector<8x512xf32>
    %c1_i32 = arith.constant 1 : i32
    %13 = vector.broadcast %c1_i32 : i32 to vector<1x512xi32>
    %14 = arith.cmpi eq, %3, %13 : vector<1x512xi32>
    %15 = vector.extract_strided_slice %2 {offsets = [8, 0], sizes = [8, 512], strides = [1, 1]} : vector<128x512xf32> to vector<8x512xf32>
    %cst_7 = arith.constant 0.000000e+00 : f32
    %16 = vector.shape_cast %14 : vector<1x512xi1> to vector<1x512xi1>
    %17 = vector.broadcast %16 : vector<1x512xi1> to vector<8x512xi1>
    %18 = vector.broadcast %cst_7 : f32 to vector<8x512xf32>
    %19 = arith.select %17, %15, %18 : vector<8x512xi1>, vector<8x512xf32>
    %20 = arith.addf %12, %19 : vector<8x512xf32>
    %c2_i32 = arith.constant 2 : i32
    %21 = vector.broadcast %c2_i32 : i32 to vector<1x512xi32>
    %22 = arith.cmpi eq, %3, %21 : vector<1x512xi32>
    %23 = vector.extract_strided_slice %2 {offsets = [16, 0], sizes = [8, 512], strides = [1, 1]} : vector<128x512xf32> to vector<8x512xf32>
    %cst_8 = arith.constant 0.000000e+00 : f32
    %24 = vector.shape_cast %22 : vector<1x512xi1> to vector<1x512xi1>
    %25 = vector.broadcast %24 : vector<1x512xi1> to vector<8x512xi1>
    %26 = vector.broadcast %cst_8 : f32 to vector<8x512xf32>
    %27 = arith.select %25, %23, %26 : vector<8x512xi1>, vector<8x512xf32>
    %28 = arith.addf %20, %27 : vector<8x512xf32>
    %c3_i32 = arith.constant 3 : i32
    %29 = vector.broadcast %c3_i32 : i32 to vector<1x512xi32>
    %30 = arith.cmpi eq, %3, %29 : vector<1x512xi32>
    %31 = vector.extract_strided_slice %2 {offsets = [24, 0], sizes = [8, 512], strides = [1, 1]} : vector<128x512xf32> to vector<8x512xf32>
    %cst_9 = arith.constant 0.000000e+00 : f32
    %32 = vector.shape_cast %30 : vector<1x512xi1> to vector<1x512xi1>
    %33 = vector.broadcast %32 : vector<1x512xi1> to vector<8x512xi1>
    %34 = vector.broadcast %cst_9 : f32 to vector<8x512xf32>
    %35 = arith.select %33, %31, %34 : vector<8x512xi1>, vector<8x512xf32>
    %36 = arith.addf %28, %35 : vector<8x512xf32>
    %c4_i32 = arith.constant 4 : i32
    %37 = vector.broadcast %c4_i32 : i32 to vector<1x512xi32>
    %38 = arith.cmpi eq, %3, %37 : vector<1x512xi32>
    %39 = vector.extract_strided_slice %2 {offsets = [32, 0], sizes = [8, 512], strides = [1, 1]} : vector<128x512xf32> to vector<8x512xf32>
    %cst_10 = arith.constant 0.000000e+00 : f32
    %40 = vector.shape_cast %38 : vector<1x512xi1> to vector<1x512xi1>
    %41 = vector.broadcast %40 : vector<1x512xi1> to vector<8x512xi1>
    %42 = vector.broadcast %cst_10 : f32 to vector<8x512xf32>
    %43 = arith.select %41, %39, %42 : vector<8x512xi1>, vector<8x512xf32>
    %44 = arith.addf %36, %43 : vector<8x512xf32>
    %c5_i32 = arith.constant 5 : i32
    %45 = vector.broadcast %c5_i32 : i32 to vector<1x512xi32>
    %46 = arith.cmpi eq, %3, %45 : vector<1x512xi32>
    %47 = vector.extract_strided_slice %2 {offsets = [40, 0], sizes = [8, 512], strides = [1, 1]} : vector<128x512xf32> to vector<8x512xf32>
    %cst_11 = arith.constant 0.000000e+00 : f32
    %48 = vector.shape_cast %46 : vector<1x512xi1> to vector<1x512xi1>
    %49 = vector.broadcast %48 : vector<1x512xi1> to vector<8x512xi1>
    %50 = vector.broadcast %cst_11 : f32 to vector<8x512xf32>
    %51 = arith.select %49, %47, %50 : vector<8x512xi1>, vector<8x512xf32>
    %52 = arith.addf %44, %51 : vector<8x512xf32>
    %c6_i32 = arith.constant 6 : i32
    %53 = vector.broadcast %c6_i32 : i32 to vector<1x512xi32>
    %54 = arith.cmpi eq, %3, %53 : vector<1x512xi32>
    %55 = vector.extract_strided_slice %2 {offsets = [48, 0], sizes = [8, 512], strides = [1, 1]} : vector<128x512xf32> to vector<8x512xf32>
    %cst_12 = arith.constant 0.000000e+00 : f32
    %56 = vector.shape_cast %54 : vector<1x512xi1> to vector<1x512xi1>
    %57 = vector.broadcast %56 : vector<1x512xi1> to vector<8x512xi1>
    %58 = vector.broadcast %cst_12 : f32 to vector<8x512xf32>
    %59 = arith.select %57, %55, %58 : vector<8x512xi1>, vector<8x512xf32>
    %60 = arith.addf %52, %59 : vector<8x512xf32>
    %c7_i32 = arith.constant 7 : i32
    %61 = vector.broadcast %c7_i32 : i32 to vector<1x512xi32>
    %62 = arith.cmpi eq, %3, %61 : vector<1x512xi32>
    %63 = vector.extract_strided_slice %2 {offsets = [56, 0], sizes = [8, 512], strides = [1, 1]} : vector<128x512xf32> to vector<8x512xf32>
    %cst_13 = arith.constant 0.000000e+00 : f32
    %64 = vector.shape_cast %62 : vector<1x512xi1> to vector<1x512xi1>
    %65 = vector.broadcast %64 : vector<1x512xi1> to vector<8x512xi1>
    %66 = vector.broadcast %cst_13 : f32 to vector<8x512xf32>
    %67 = arith.select %65, %63, %66 : vector<8x512xi1>, vector<8x512xf32>
    %68 = arith.addf %60, %67 : vector<8x512xf32>
    %c8_i32 = arith.constant 8 : i32
    %69 = vector.broadcast %c8_i32 : i32 to vector<1x512xi32>
    %70 = arith.cmpi eq, %3, %69 : vector<1x512xi32>
    %71 = vector.extract_strided_slice %2 {offsets = [64, 0], sizes = [8, 512], strides = [1, 1]} : vector<128x512xf32> to vector<8x512xf32>
    %cst_14 = arith.constant 0.000000e+00 : f32
    %72 = vector.shape_cast %70 : vector<1x512xi1> to vector<1x512xi1>
    %73 = vector.broadcast %72 : vector<1x512xi1> to vector<8x512xi1>
    %74 = vector.broadcast %cst_14 : f32 to vector<8x512xf32>
    %75 = arith.select %73, %71, %74 : vector<8x512xi1>, vector<8x512xf32>
    %76 = arith.addf %68, %75 : vector<8x512xf32>
    %c9_i32 = arith.constant 9 : i32
    %77 = vector.broadcast %c9_i32 : i32 to vector<1x512xi32>
    %78 = arith.cmpi eq, %3, %77 : vector<1x512xi32>
    %79 = vector.extract_strided_slice %2 {offsets = [72, 0], sizes = [8, 512], strides = [1, 1]} : vector<128x512xf32> to vector<8x512xf32>
    %cst_15 = arith.constant 0.000000e+00 : f32
    %80 = vector.shape_cast %78 : vector<1x512xi1> to vector<1x512xi1>
    %81 = vector.broadcast %80 : vector<1x512xi1> to vector<8x512xi1>
    %82 = vector.broadcast %cst_15 : f32 to vector<8x512xf32>
    %83 = arith.select %81, %79, %82 : vector<8x512xi1>, vector<8x512xf32>
    %84 = arith.addf %76, %83 : vector<8x512xf32>
    %c10_i32 = arith.constant 10 : i32
    %85 = vector.broadcast %c10_i32 : i32 to vector<1x512xi32>
    %86 = arith.cmpi eq, %3, %85 : vector<1x512xi32>
    %87 = vector.extract_strided_slice %2 {offsets = [80, 0], sizes = [8, 512], strides = [1, 1]} : vector<128x512xf32> to vector<8x512xf32>
    %cst_16 = arith.constant 0.000000e+00 : f32
    %88 = vector.shape_cast %86 : vector<1x512xi1> to vector<1x512xi1>
    %89 = vector.broadcast %88 : vector<1x512xi1> to vector<8x512xi1>
    %90 = vector.broadcast %cst_16 : f32 to vector<8x512xf32>
    %91 = arith.select %89, %87, %90 : vector<8x512xi1>, vector<8x512xf32>
    %92 = arith.addf %84, %91 : vector<8x512xf32>
    %c11_i32 = arith.constant 11 : i32
    %93 = vector.broadcast %c11_i32 : i32 to vector<1x512xi32>
    %94 = arith.cmpi eq, %3, %93 : vector<1x512xi32>
    %95 = vector.extract_strided_slice %2 {offsets = [88, 0], sizes = [8, 512], strides = [1, 1]} : vector<128x512xf32> to vector<8x512xf32>
    %cst_17 = arith.constant 0.000000e+00 : f32
    %96 = vector.shape_cast %94 : vector<1x512xi1> to vector<1x512xi1>
    %97 = vector.broadcast %96 : vector<1x512xi1> to vector<8x512xi1>
    %98 = vector.broadcast %cst_17 : f32 to vector<8x512xf32>
    %99 = arith.select %97, %95, %98 : vector<8x512xi1>, vector<8x512xf32>
    %100 = arith.addf %92, %99 : vector<8x512xf32>
    %c12_i32 = arith.constant 12 : i32
    %101 = vector.broadcast %c12_i32 : i32 to vector<1x512xi32>
    %102 = arith.cmpi eq, %3, %101 : vector<1x512xi32>
    %103 = vector.extract_strided_slice %2 {offsets = [96, 0], sizes = [8, 512], strides = [1, 1]} : vector<128x512xf32> to vector<8x512xf32>
    %cst_18 = arith.constant 0.000000e+00 : f32
    %104 = vector.shape_cast %102 : vector<1x512xi1> to vector<1x512xi1>
    %105 = vector.broadcast %104 : vector<1x512xi1> to vector<8x512xi1>
    %106 = vector.broadcast %cst_18 : f32 to vector<8x512xf32>
    %107 = arith.select %105, %103, %106 : vector<8x512xi1>, vector<8x512xf32>
    %108 = arith.addf %100, %107 : vector<8x512xf32>
    %c13_i32 = arith.constant 13 : i32
    %109 = vector.broadcast %c13_i32 : i32 to vector<1x512xi32>
    %110 = arith.cmpi eq, %3, %109 : vector<1x512xi32>
    %111 = vector.extract_strided_slice %2 {offsets = [104, 0], sizes = [8, 512], strides = [1, 1]} : vector<128x512xf32> to vector<8x512xf32>
    %cst_19 = arith.constant 0.000000e+00 : f32
    %112 = vector.shape_cast %110 : vector<1x512xi1> to vector<1x512xi1>
    %113 = vector.broadcast %112 : vector<1x512xi1> to vector<8x512xi1>
    %114 = vector.broadcast %cst_19 : f32 to vector<8x512xf32>
    %115 = arith.select %113, %111, %114 : vector<8x512xi1>, vector<8x512xf32>
    %116 = arith.addf %108, %115 : vector<8x512xf32>
    %c14_i32 = arith.constant 14 : i32
    %117 = vector.broadcast %c14_i32 : i32 to vector<1x512xi32>
    %118 = arith.cmpi eq, %3, %117 : vector<1x512xi32>
    %119 = vector.extract_strided_slice %2 {offsets = [112, 0], sizes = [8, 512], strides = [1, 1]} : vector<128x512xf32> to vector<8x512xf32>
    %cst_20 = arith.constant 0.000000e+00 : f32
    %120 = vector.shape_cast %118 : vector<1x512xi1> to vector<1x512xi1>
    %121 = vector.broadcast %120 : vector<1x512xi1> to vector<8x512xi1>
    %122 = vector.broadcast %cst_20 : f32 to vector<8x512xf32>
    %123 = arith.select %121, %119, %122 : vector<8x512xi1>, vector<8x512xf32>
    %124 = arith.addf %116, %123 : vector<8x512xf32>
    %c15_i32 = arith.constant 15 : i32
    %125 = vector.broadcast %c15_i32 : i32 to vector<1x512xi32>
    %126 = arith.cmpi eq, %3, %125 : vector<1x512xi32>
    %127 = vector.extract_strided_slice %2 {offsets = [120, 0], sizes = [8, 512], strides = [1, 1]} : vector<128x512xf32> to vector<8x512xf32>
    %cst_21 = arith.constant 0.000000e+00 : f32
    %128 = vector.shape_cast %126 : vector<1x512xi1> to vector<1x512xi1>
    %129 = vector.broadcast %128 : vector<1x512xi1> to vector<8x512xi1>
    %130 = vector.broadcast %cst_21 : f32 to vector<8x512xf32>
    %131 = arith.select %129, %127, %130 : vector<8x512xi1>, vector<8x512xf32>
    %132 = arith.addf %124, %131 : vector<8x512xf32>
    %133 = arith.truncf %132 : vector<8x512xf32> to vector<8x512xbf16>
    %c0_22 = arith.constant 0 : index
    %c0_23 = arith.constant 0 : index
    %134 = vector.load %arg4[%c0_22, %c0_23] : memref<9x512xbf16, #tpu.memory_space<vmem>>, vector<8x512xbf16>
    tpu.vector_store %arg4[%c0_22, %c0_23], %133 {strides = array<i32>} : memref<9x512xbf16, #tpu.memory_space<vmem>>, vector<8x512xbf16>,
    %cst_24 = arith.constant 1.000000e+00 : bf16
    %135 = vector.broadcast %cst_24 : bf16 to vector<1x512xbf16>
    %c8 = arith.constant 8 : index
    %c0_25 = arith.constant 0 : index
    %136 = vector.load %arg4[%c8, %c0_25] : memref<9x512xbf16, #tpu.memory_space<vmem>>, vector<1x512xbf16>
    tpu.vector_store %arg4[%c8, %c0_25], %135 {strides = array<i32>} : memref<9x512xbf16, #tpu.memory_space<vmem>>, vector<1x512xbf16>,
    return
  }
  func.func @transform_0(%arg0: i32) -> (i32, i32) {
    %c0_i32 = arith.constant 0 : i32
    %c0_i32_0 = arith.constant 0 : i32
    return %c0_i32, %arg0 : i32, i32
  }
  func.func @transform_1(%arg0: i32) -> (i32, i32) {
    %c0_i32 = arith.constant 0 : i32
    %c0_i32_0 = arith.constant 0 : i32
    return %c0_i32, %arg0 : i32, i32
  }
  func.func @transform_2(%arg0: i32) -> (i32, i32) {
    %c0_i32 = arith.constant 0 : i32
    %c0_i32_0 = arith.constant 0 : i32
    %c0_i32_1 = arith.constant 0 : i32
    return %c0_i32, %c0_i32_0 : i32, i32
  }
  func.func @transform_3(%arg0: i32) -> (i32, i32) {
    %c0_i32 = arith.constant 0 : i32
    %c0_i32_0 = arith.constant 0 : i32
    return %c0_i32, %arg0 : i32, i32
  }
}

</mosaic_0001>

<llo_original>
// kernel: to_bev_convolution.2
$region0: #{to_bev_convolution.2}
  #allocation0 [shape = 'u32[]', space=smem, size = 0x4, offset = 0x4, fixed_abs, tag = 'smem constant byte address 0x4 - core index']
  #allocation1 [shape = 'u32[72,128]{1,0:T(1,128)}', space=vmem, size = 0x9000, scoped, tag = 'internal scratch']
  %s0 = inlined_call_operand.vmem [shape: f32[16,1024], index: 0, kind: input, shape index: {}]
  %s1 = inlined_call_operand.vmem [shape: s32[1,1024], index: 1, kind: input, shape index: {}]
  %s2 = inlined_call_operand.vmem [shape: f32[128,16], index: 2, kind: input, shape index: {}]
  %s3 = inlined_call_operand.vmem [shape: bf16[9,1024], index: 3, kind: output, shape index: {}]
  %s4 = sld [smem:[#allocation0]]
  $region87: #{to_bev_convolution.2} parent=0
    _
  %s6 = ssub.s32 1, %s4
  %s7 = scalar_select 0, %s6, %s4
  $region1: #{to_bev_convolution.2} parent=0
    #allocation2 [shape = 'u8[65536]{0}', space=vmem, size = 0x10000, scoped, tag = 'input window, operand 0']
    #allocation3 [shape = 'u8[32768]{0}', space=vmem, size = 0x8000, scoped, tag = 'output window, operand 0']
    loop: start=0, step=1, limit=4
    $region2: #{to_bev_convolution.2} parent=1 // loop_pre_header
      _
    $region3: #{to_bev_convolution.2} parent=1 // loop_header
      %s9 = sphi 0, %s13
      %p10 = scmp.ge.s32.totalorder %s9, 4
      %s19 = sphi 0, %s21
      %s22 = sphi 0, %s19
      %s23 = sphi 0, %s22
      %s39 = sphi 0, %s23
      %s45 = sphi 0, %s47
      %s48 = sphi 0, %s45
      %s49 = sphi 0, %s48
      %s65 = sphi 0, %s49
      %s69 = sphi 0, %s69
      %s71 = sphi 0, %s69
      %s72 = sphi 0, %s71
      %s86 = sphi 0, %s72
      %s92 = sphi 0, %s94
      %s95 = sphi 0, %s92
      %s96 = sphi 0, %s95
      %s112 = sphi 0, %s96
    $region4: #{to_bev_convolution.2} parent=1 // loop_header_branch
      %12 = sbr.rel (%p10) target = $region8
    $region5: #{to_bev_convolution.2} parent=1 // loop_body
      %s14 = ssub.s32 %s9, 1
      %s15 = ssub.s32 %s9, 2
      %s16 = sadd.s32 %s9, 1
      %s17 = ssub.s32 %s9, %s16
      %p18 = scmp.eq.s32.totalorder %s17, 0
      %s20 = sadd.s32 %s19, 1
      %s21 = scalar_select %p18, %s19, %s20
      %p24 = pneg %p18
      %p25 = scmp.eq.s32.totalorder %s9, 1
      %p26 = por %p24, %p25
      %p27 = scmp.ne.s32.totalorder %s19, %s22
      %p28 = scmp.eq.s32.totalorder %s9, 0
      %p29 = por %p27, %p28
      %p30 = scmp.ne.s32.totalorder %s19, %s22
      %p31 = scmp.eq.s32.totalorder %s14, 1
      %p32 = por %p30, %p31
      %p33 = scmp.ne.s32.totalorder %s22, %s23
      %p34 = scmp.eq.s32.totalorder %s14, 0
      %p35 = por %p33, %p34
      %p36 = scmp.ne.s32.totalorder %s22, %s23
      %p37 = scmp.eq.s32.totalorder %s15, 1
      %p38 = por %p36, %p37
      %p40 = scmp.ne.s32.totalorder %s23, %s39
      %p41 = scmp.eq.s32.totalorder %s15, 0
      %p42 = por %p40, %p41
      %s43 = ssub.s32 %s9, %s16
      %p44 = scmp.eq.s32.totalorder %s43, 0
      %s46 = sadd.s32 %s45, 1
      %s47 = scalar_select %p44, %s45, %s46
      %p50 = pneg %p44
      %p51 = scmp.eq.s32.totalorder %s9, 1
      %p52 = por %p50, %p51
      %p53 = scmp.ne.s32.totalorder %s45, %s48
      %p54 = scmp.eq.s32.totalorder %s9, 0
      %p55 = por %p53, %p54
      %p56 = scmp.ne.s32.totalorder %s45, %s48
      %p57 = scmp.eq.s32.totalorder %s14, 1
      %p58 = por %p56, %p57
      %p59 = scmp.ne.s32.totalorder %s48, %s49
      %p60 = scmp.eq.s32.totalorder %s14, 0
      %p61 = por %p59, %p60
      %p62 = scmp.ne.s32.totalorder %s48, %s49
      %p63 = scmp.eq.s32.totalorder %s15, 1
      %p64 = por %p62, %p63
      %p66 = scmp.ne.s32.totalorder %s49, %s65
      %p67 = scmp.eq.s32.totalorder %s15, 0
      %p68 = por %p66, %p67
      %s70 = sadd.s32 %s69, 1
      %p73 = scmp.eq.s32.totalorder %s9, 1
      %p74 = scmp.ne.s32.totalorder %s69, %s71
      %p75 = scmp.eq.s32.totalorder %s9, 0
      %p76 = por %p74, %p75
      %p77 = scmp.ne.s32.totalorder %s69, %s71
      %p78 = scmp.eq.s32.totalorder %s14, 1
      %p79 = por %p77, %p78
      %p80 = scmp.ne.s32.totalorder %s71, %s72
      %p81 = scmp.eq.s32.totalorder %s14, 0
      %p82 = por %p80, %p81
      %p83 = scmp.ne.s32.totalorder %s71, %s72
      %p84 = scmp.eq.s32.totalorder %s15, 1
      %p85 = por %p83, %p84
      %p87 = scmp.ne.s32.totalorder %s72, %s86
      %p88 = scmp.eq.s32.totalorder %s15, 0
      %p89 = por %p87, %p88
      %s90 = ssub.s32 %s9, %s16
      %p91 = scmp.eq.s32.totalorder %s90, 0
      %s93 = sadd.s32 %s92, 1
      %s94 = scalar_select %p91, %s92, %s93
      %p97 = pneg %p91
      %p98 = scmp.eq.s32.totalorder %s9, 1
      %p99 = por %p97, %p98
      %p100 = scmp.ne.s32.totalorder %s92, %s95
      %p101 = scmp.eq.s32.totalorder %s9, 0
      %p102 = por %p100, %p101
      %p103 = scmp.ne.s32.totalorder %s92, %s95
      %p104 = scmp.eq.s32.totalorder %s14, 1
      %p105 = por %p103, %p104
      %p106 = scmp.ne.s32.totalorder %s95, %s96
      %p107 = scmp.eq.s32.totalorder %s14, 0
      %p108 = por %p106, %p107
      %p109 = scmp.ne.s32.totalorder %s95, %s96
      %p110 = scmp.eq.s32.totalorder %s15, 1
      %p111 = por %p109, %p110
      %p113 = scmp.ne.s32.totalorder %s96, %s112
      %p114 = scmp.eq.s32.totalorder %s15, 0
      %p115 = por %p113, %p114
      %p116 = scmp.le.s32.totalorder 1, %s9
      %p117 = scmp.lt.s32.totalorder %s9, 3
      %p118 = pnand %p116, %p117
      %p119 = pneg %p118
      // Predicated region
      $region9: #{to_bev_convolution.2} parent=5 // pred_check
        _
      $region10: #{to_bev_convolution.2} parent=5 // pred_check_branch
        %121 = sbr.rel (%p118) target = $region12
      $region11: #{to_bev_convolution.2} parent=5 // pred_region
        %s122 = ssub.s32 %s9, 1
        // Predicated region
        $region13: #{to_bev_convolution.2} parent=11 // pred_check
          %p123 = pneg %p82
        $region14: #{to_bev_convolution.2} parent=11 // pred_check_branch
          %125 = sbr.rel (%p123) target = $region16
        $region15: #{to_bev_convolution.2} parent=11 // pred_region
          _
        $region16: #{to_bev_convolution.2} parent=11 // pred_fallthru
          _
      $region12: #{to_bev_convolution.2} parent=5 // pred_fallthru
        _
      %p126 = scmp.lt.s32.totalorder %s9, 2
      // Predicated region
      $region17: #{to_bev_convolution.2} parent=5 // pred_check
        %p127 = pneg %p126
      $region18: #{to_bev_convolution.2} parent=5 // pred_check_branch
        %129 = sbr.rel (%p127) target = $region20
      $region19: #{to_bev_convolution.2} parent=5 // pred_region
        // Predicated region
        $region21: #{to_bev_convolution.2} parent=19 // pred_check
          %p130 = pneg %p29
        $region22: #{to_bev_convolution.2} parent=19 // pred_check_branch
          %132 = sbr.rel (%p130) target = $region24
        $region23: #{to_bev_convolution.2} parent=19 // pred_region
          %s133 = sand.u32 %s19, 1
          %s134 = sand.u32 %s19, 1
          %s135 = smul.addr %s134, 64
          %s136 = scalar_lea.vmem [#allocation2], %s135
          %s137 = smul.u32 4, %s9
          %s138 = smul.addr %s137, 8
          %s139 = scalar_lea.vmem %s0, %s138
          // Predicated region
          $region25: #{to_bev_convolution.2} parent=23 // pred_check
            _
          $region26: #{to_bev_convolution.2} parent=23 // pred_check_branch
            %141 = sbr.rel (0) target = $region28
          $region27: #{to_bev_convolution.2} parent=23 // pred_region
            // Predicated region
            $region29: #{to_bev_convolution.2} parent=27 // pred_check
              _
            $region30: #{to_bev_convolution.2} parent=27 // pred_check_branch
              %143 = sbr.rel (0) target = $region32
            $region31: #{to_bev_convolution.2} parent=27 // pred_region
              loop: start=0, step=1, limit=1
              $region33: #{to_bev_convolution.2} parent=31 // loop_pre_header
                _
              $region34: #{to_bev_convolution.2} parent=31 // loop_header
                %s145 = sphi 0, %s149
                %p146 = scmp.ge.s32.totalorder %s145, 1
                %s150 = sphi %s139, %s139
                %s151 = sphi %s136, %s136
              $region35: #{to_bev_convolution.2} parent=31 // loop_header_branch
                %148 = sbr.rel (%p146) target = $region39
              $region36: #{to_bev_convolution.2} parent=31 // loop_body
                %v152 = vld [vmem:[%s150] sm:$0xff]
                %153 = vst [vmem:[%s151] sm:$0xff] %v152
                %v154 = vld [vmem:[%s150 + $0x8] sm:$0xff]
                %155 = vst [vmem:[%s151 + $0x8] sm:$0xff] %v154
                %v156 = vld [vmem:[%s150 + $0x10] sm:$0xff]
                %157 = vst [vmem:[%s151 + $0x10] sm:$0xff] %v156
                %v158 = vld [vmem:[%s150 + $0x18] sm:$0xff]
                %159 = vst [vmem:[%s151 + $0x18] sm:$0xff] %v158
                %v160 = vld [vmem:[%s150 + $0x40] sm:$0xff]
                %161 = vst [vmem:[%s151 + $0x20] sm:$0xff] %v160
                %v162 = vld [vmem:[%s150 + $0x48] sm:$0xff]
                %163 = vst [vmem:[%s151 + $0x28] sm:$0xff] %v162
                %v164 = vld [vmem:[%s150 + $0x50] sm:$0xff]
                %165 = vst [vmem:[%s151 + $0x30] sm:$0xff] %v164
                %v166 = vld [vmem:[%s150 + $0x58] sm:$0xff]
                %167 = vst [vmem:[%s151 + $0x38] sm:$0xff] %v166
              $region37: #{to_bev_convolution.2} parent=31 // loop_footer
                %s149 = sadd.s32 1, %s145
              $region38: #{to_bev_convolution.2} parent=31 // loop_footer_branch
                %144 = sbr.rel target = $region34
              $region39: #{to_bev_convolution.2} parent=31 // loop_exit
                _
            $region32: #{to_bev_convolution.2} parent=27 // pred_fallthru
              _
            // Predicated region
            $region40: #{to_bev_convolution.2} parent=27 // pred_check
              _
            $region41: #{to_bev_convolution.2} parent=27 // pred_check_branch
              %169 = sbr.rel target = $region43
            $region42: #{to_bev_convolution.2} parent=27 // pred_region
              _
            $region43: #{to_bev_convolution.2} parent=27 // pred_fallthru
              _
          $region28: #{to_bev_convolution.2} parent=23 // pred_fallthru
            _
          %170 = vnop
        $region24: #{to_bev_convolution.2} parent=19 // pred_fallthru
          _
        // Predicated region
        $region44: #{to_bev_convolution.2} parent=19 // pred_check
          %p171 = pneg %p55
        $region45: #{to_bev_convolution.2} parent=19 // pred_check_branch
          %173 = sbr.rel (%p171) target = $region47
        $region46: #{to_bev_convolution.2} parent=19 // pred_region
          %s174 = smul.u32 4, %s9
          %p175 = scmp.lt.s32.totalorder %s174, 7
          %s176 = scalar_select %p175, %s174, 7
          %s177 = scalar_lea.vmem %s1, %s176
          %s178 = smul.u32 4, %s9
        $region47: #{to_bev_convolution.2} parent=19 // pred_fallthru
          _
      $region20: #{to_bev_convolution.2} parent=5 // pred_fallthru
        _
      %p179 = scmp.le.s32.totalorder 1, %s9
      %p180 = scmp.lt.s32.totalorder %s9, 3
      %p181 = pnand %p179, %p180
      %p182 = pneg %p181
      // Predicated region
      $region48: #{to_bev_convolution.2} parent=5 // pred_check
        _
      $region49: #{to_bev_convolution.2} parent=5 // pred_check_branch
        %184 = sbr.rel (%p181) target = $region51
      $region50: #{to_bev_convolution.2} parent=5 // pred_region
        %s185 = ssub.s32 %s9, 1
        %s186 = sand.u32 %s22, 1
        %s187 = sand.u32 %s22, 1
        %s188 = smul.addr %s187, 64
        %s189 = scalar_lea.vmem [#allocation2], %s188
        // Predicated region
        $region52: #{to_bev_convolution.2} parent=50 // pred_check
          %p190 = pneg %p35
        $region53: #{to_bev_convolution.2} parent=50 // pred_check_branch
          %192 = sbr.rel (%p190) target = $region55
        $region54: #{to_bev_convolution.2} parent=50 // pred_region
          _
        $region55: #{to_bev_convolution.2} parent=50 // pred_fallthru
          _
        %s193 = sand.u32 %s22, 1
        %s194 = sand.u32 %s22, 1
        %s195 = smul.addr %s194, 64
        %s196 = scalar_lea.vmem [#allocation2], %s195
        %p197 = pneg %p35
        %p198 = pneg %p32
        %s199 = smul.u32 4, %s14
        %p200 = scmp.lt.s32.totalorder %s199, 7
        %s201 = scalar_select %p200, %s199, 7
        %s202 = scalar_lea.vmem %s1, %s201
        %p203 = pneg %p61
        %p204 = pneg %p58
        %p205 = pneg %p82
        %p206 = pneg %p79
        %p207 = pneg %p108
        %p208 = pneg %p105
        %s209 = sand.u32 %s95, 1
        %s210 = sand.u32 %s95, 1
        %s211 = smul.addr %s210, 32
        %s212 = scalar_lea.vmem [#allocation3], %s211
        %s213 = smul.u32 4, %s14
        %s214 = smul.u32 4, %s14
        %p215 = scmp.lt.s32.totalorder %s214, 7
        %s216 = scalar_select %p215, %s214, 7
        %s217 = scalar_lea.vmem %s1, %s216
        %s218 = smul.u32 4, %s14
        %s219 = smul.u32 4, %s14
        %v221 = vld [vmem:[%s189] sm:$0xff]
        %v222 = vld [vmem:[%s189 + $0x8] sm:$0xff]
        %v223 = vld [vmem:[%s189 + $0x10] sm:$0xff]
        %v224 = vld [vmem:[%s189 + $0x18] sm:$0xff]
        %v225 = vld [vmem:[%s189 + $0x20] sm:$0xff]
        %v226 = vld [vmem:[%s189 + $0x28] sm:$0xff]
        %v227 = vld [vmem:[%s189 + $0x30] sm:$0xff]
        %v228 = vld [vmem:[%s189 + $0x38] sm:$0xff]
        %v229 = vld [vmem:[%s2] sm:$0xff]
        %v230 = vld [vmem:[%s2 + $0x8] sm:$0xff]
        %v231 = vld [vmem:[%s2 + $0x10] sm:$0xff]
        %v232 = vld [vmem:[%s2 + $0x18] sm:$0xff]
        %v233 = vld [vmem:[%s2 + $0x20] sm:$0xff]
        %v234 = vld [vmem:[%s2 + $0x28] sm:$0xff]
        %v235 = vld [vmem:[%s2 + $0x30] sm:$0xff]
        %v236 = vld [vmem:[%s2 + $0x38] sm:$0xff]
        %v237 = vld [vmem:[%s2 + $0x40] sm:$0xff]
        %v238 = vld [vmem:[%s2 + $0x48] sm:$0xff]
        %v239 = vld [vmem:[%s2 + $0x50] sm:$0xff]
        %v240 = vld [vmem:[%s2 + $0x58] sm:$0xff]
        %v241 = vld [vmem:[%s2 + $0x60] sm:$0xff]
        %v242 = vld [vmem:[%s2 + $0x68] sm:$0xff]
        %v243 = vld [vmem:[%s2 + $0x70] sm:$0xff]
        %v244 = vld [vmem:[%s2 + $0x78] sm:$0xff]
        %vm245 = vcmask 130048
        %v247 = vsel %vm245, %v229, 0
        %v250 = vsel %vm245, %v230, 0
        %v253 = vsel %vm245, %v231, 0
        %v256 = vsel %vm245, %v232, 0
        %v259 = vsel %vm245, %v233, 0
        %v262 = vsel %vm245, %v234, 0
        %v265 = vsel %vm245, %v235, 0
        %v268 = vsel %vm245, %v236, 0
        %v271 = vsel %vm245, %v237, 0
        %v274 = vsel %vm245, %v238, 0
        %v277 = vsel %vm245, %v239, 0
        %v280 = vsel %vm245, %v240, 0
        %v283 = vsel %vm245, %v241, 0
        %v286 = vsel %vm245, %v242, 0
        %v289 = vsel %vm245, %v243, 0
        %v292 = vsel %vm245, %v244, 0
        %294 = vmatpush.msra.mxu0 0.0
        %295 = vmatpush.msra.mxu0 0.0
        %296 = vmatpush.msra.mxu0 0.0
        %297 = vmatpush.msra.mxu0 0.0
        %298 = vmatpush.msra.mxu0 0.0
        %299 = vmatpush.msra.mxu0 0.0
        %300 = vmatpush.msra.mxu0 0.0
        %301 = vmatpush.msra.mxu0 0.0
        %302 = vmatpush.msra.mxu0 0.0
        %303 = vmatpush.msra.mxu0 0.0
        %304 = vmatpush.msra.mxu0 0.0
        %305 = vmatpush.msra.mxu0 0.0
        %306 = vmatpush.msra.mxu0 0.0
        %307 = vmatpush.msra.mxu0 0.0
        %308 = vmatpush.msra.mxu0 %v225
        %309 = vmatpush.msra.mxu0 %v221
        %310 = vmatmul.f32.gmra.mxu0 %v247
        %v311 = vpop.f32.mrf.mxu0
        %v312 = vadd.f32 0.0, %v311
        %313 = vmatmul.f32.gmra.mxu0 %v250
        %v314 = vpop.f32.mrf.mxu0
        %v315 = vadd.f32 0.0, %v314
        %316 = vmatmul.f32.gmra.mxu0 %v253
        %v317 = vpop.f32.mrf.mxu0
        %v318 = vadd.f32 0.0, %v317
        %319 = vmatmul.f32.gmra.mxu0 %v256
        %v320 = vpop.f32.mrf.mxu0
        %v321 = vadd.f32 0.0, %v320
        %322 = vmatmul.f32.gmra.mxu0 %v259
        %v323 = vpop.f32.mrf.mxu0
        %v324 = vadd.f32 0.0, %v323
        %325 = vmatmul.f32.gmra.mxu0 %v262
        %v326 = vpop.f32.mrf.mxu0
        %v327 = vadd.f32 0.0, %v326
        %328 = vmatmul.f32.gmra.mxu0 %v265
        %v329 = vpop.f32.mrf.mxu0
        %v330 = vadd.f32 0.0, %v329
        %331 = vmatmul.f32.gmra.mxu0 %v268
        %v332 = vpop.f32.mrf.mxu0
        %v333 = vadd.f32 0.0, %v332
        %334 = vmatmul.f32.gmra.mxu0 %v271
        %v335 = vpop.f32.mrf.mxu0
        %v336 = vadd.f32 0.0, %v335
        %337 = vmatmul.f32.gmra.mxu0 %v274
        %v338 = vpop.f32.mrf.mxu0
        %v339 = vadd.f32 0.0, %v338
        %340 = vmatmul.f32.gmra.mxu0 %v277
        %v341 = vpop.f32.mrf.mxu0
        %v342 = vadd.f32 0.0, %v341
        %343 = vmatmul.f32.gmra.mxu0 %v280
        %v344 = vpop.f32.mrf.mxu0
        %v345 = vadd.f32 0.0, %v344
        %346 = vmatmul.f32.gmra.mxu0 %v283
        %v347 = vpop.f32.mrf.mxu0
        %v348 = vadd.f32 0.0, %v347
        %349 = vmatmul.f32.gmra.mxu0 %v286
        %v350 = vpop.f32.mrf.mxu0
        %v351 = vadd.f32 0.0, %v350
        %352 = vmatmul.f32.gmra.mxu0 %v289
        %v353 = vpop.f32.mrf.mxu0
        %v354 = vadd.f32 0.0, %v353
        %355 = vmatmul.f32.gmra.mxu0 %v292
        %v356 = vpop.f32.mrf.mxu0
        %v357 = vadd.f32 0.0, %v356
        %358 = vdwg.mxu0
        %359 = vmatpush.msra.mxu0 0.0
        %360 = vmatpush.msra.mxu0 0.0
        %361 = vmatpush.msra.mxu0 0.0
        %362 = vmatpush.msra.mxu0 0.0
        %363 = vmatpush.msra.mxu0 0.0
        %364 = vmatpush.msra.mxu0 0.0
        %365 = vmatpush.msra.mxu0 0.0
        %366 = vmatpush.msra.mxu0 0.0
        %367 = vmatpush.msra.mxu0 0.0
        %368 = vmatpush.msra.mxu0 0.0
        %369 = vmatpush.msra.mxu0 0.0
        %370 = vmatpush.msra.mxu0 0.0
        %371 = vmatpush.msra.mxu0 0.0
        %372 = vmatpush.msra.mxu0 0.0
        %373 = vmatpush.msra.mxu0 %v226
        %374 = vmatpush.msra.mxu0 %v222
        %375 = vmatmul.f32.gmra.mxu0 %v247
        %v376 = vpop.f32.mrf.mxu0
        %v377 = vadd.f32 0.0, %v376
        %378 = vmatmul.f32.gmra.mxu0 %v250
        %v379 = vpop.f32.mrf.mxu0
        %v380 = vadd.f32 0.0, %v379
        %381 = vmatmul.f32.gmra.mxu0 %v253
        %v382 = vpop.f32.mrf.mxu0
        %v383 = vadd.f32 0.0, %v382
        %384 = vmatmul.f32.gmra.mxu0 %v256
        %v385 = vpop.f32.mrf.mxu0
        %v386 = vadd.f32 0.0, %v385
        %387 = vmatmul.f32.gmra.mxu0 %v259
        %v388 = vpop.f32.mrf.mxu0
        %v389 = vadd.f32 0.0, %v388
        %390 = vmatmul.f32.gmra.mxu0 %v262
        %v391 = vpop.f32.mrf.mxu0
        %v392 = vadd.f32 0.0, %v391
        %393 = vmatmul.f32.gmra.mxu0 %v265
        %v394 = vpop.f32.mrf.mxu0
        %v395 = vadd.f32 0.0, %v394
        %396 = vmatmul.f32.gmra.mxu0 %v268
        %v397 = vpop.f32.mrf.mxu0
        %v398 = vadd.f32 0.0, %v397
        %399 = vmatmul.f32.gmra.mxu0 %v271
        %v400 = vpop.f32.mrf.mxu0
        %v401 = vadd.f32 0.0, %v400
        %402 = vmatmul.f32.gmra.mxu0 %v274
        %v403 = vpop.f32.mrf.mxu0
        %v404 = vadd.f32 0.0, %v403
        %405 = vmatmul.f32.gmra.mxu0 %v277
        %v406 = vpop.f32.mrf.mxu0
        %v407 = vadd.f32 0.0, %v406
        %408 = vmatmul.f32.gmra.mxu0 %v280
        %v409 = vpop.f32.mrf.mxu0
        %v410 = vadd.f32 0.0, %v409
        %411 = vmatmul.f32.gmra.mxu0 %v283
        %v412 = vpop.f32.mrf.mxu0
        %v413 = vadd.f32 0.0, %v412
        %414 = vmatmul.f32.gmra.mxu0 %v286
        %v415 = vpop.f32.mrf.mxu0
        %v416 = vadd.f32 0.0, %v415
        %417 = vmatmul.f32.gmra.mxu0 %v289
        %v418 = vpop.f32.mrf.mxu0
        %v419 = vadd.f32 0.0, %v418
        %420 = vmatmul.f32.gmra.mxu0 %v292
        %v421 = vpop.f32.mrf.mxu0
        %v422 = vadd.f32 0.0, %v421
        %423 = vdwg.mxu0
        %424 = vmatpush.msra.mxu0 0.0
        %425 = vmatpush.msra.mxu0 0.0
        %426 = vmatpush.msra.mxu0 0.0
        %427 = vmatpush.msra.mxu0 0.0
        %428 = vmatpush.msra.mxu0 0.0
        %429 = vmatpush.msra.mxu0 0.0
        %430 = vmatpush.msra.mxu0 0.0
        %431 = vmatpush.msra.mxu0 0.0
        %432 = vmatpush.msra.mxu0 0.0
        %433 = vmatpush.msra.mxu0 0.0
        %434 = vmatpush.msra.mxu0 0.0
        %435 = vmatpush.msra.mxu0 0.0
        %436 = vmatpush.msra.mxu0 0.0
        %437 = vmatpush.msra.mxu0 0.0
        %438 = vmatpush.msra.mxu0 %v227
        %439 = vmatpush.msra.mxu0 %v223
        %440 = vmatmul.f32.gmra.mxu0 %v247
        %v441 = vpop.f32.mrf.mxu0
        %v442 = vadd.f32 0.0, %v441
        %443 = vmatmul.f32.gmra.mxu0 %v250
        %v444 = vpop.f32.mrf.mxu0
        %v445 = vadd.f32 0.0, %v444
        %446 = vmatmul.f32.gmra.mxu0 %v253
        %v447 = vpop.f32.mrf.mxu0
        %v448 = vadd.f32 0.0, %v447
        %449 = vmatmul.f32.gmra.mxu0 %v256
        %v450 = vpop.f32.mrf.mxu0
        %v451 = vadd.f32 0.0, %v450
        %452 = vmatmul.f32.gmra.mxu0 %v259
        %v453 = vpop.f32.mrf.mxu0
        %v454 = vadd.f32 0.0, %v453
        %455 = vmatmul.f32.gmra.mxu0 %v262
        %v456 = vpop.f32.mrf.mxu0
        %v457 = vadd.f32 0.0, %v456
        %458 = vmatmul.f32.gmra.mxu0 %v265
        %v459 = vpop.f32.mrf.mxu0
        %v460 = vadd.f32 0.0, %v459
        %461 = vmatmul.f32.gmra.mxu0 %v268
        %v462 = vpop.f32.mrf.mxu0
        %v463 = vadd.f32 0.0, %v462
        %464 = vmatmul.f32.gmra.mxu0 %v271
        %v465 = vpop.f32.mrf.mxu0
        %v466 = vadd.f32 0.0, %v465
        %467 = vmatmul.f32.gmra.mxu0 %v274
        %v468 = vpop.f32.mrf.mxu0
        %v469 = vadd.f32 0.0, %v468
        %470 = vmatmul.f32.gmra.mxu0 %v277
        %v471 = vpop.f32.mrf.mxu0
        %v472 = vadd.f32 0.0, %v471
        %473 = vmatmul.f32.gmra.mxu0 %v280
        %v474 = vpop.f32.mrf.mxu0
        %v475 = vadd.f32 0.0, %v474
        %476 = vmatmul.f32.gmra.mxu0 %v283
        %v477 = vpop.f32.mrf.mxu0
        %v478 = vadd.f32 0.0, %v477
        %479 = vmatmul.f32.gmra.mxu0 %v286
        %v480 = vpop.f32.mrf.mxu0
        %v481 = vadd.f32 0.0, %v480
        %482 = vmatmul.f32.gmra.mxu0 %v289
        %v483 = vpop.f32.mrf.mxu0
        %v484 = vadd.f32 0.0, %v483
        %485 = vmatmul.f32.gmra.mxu0 %v292
        %v486 = vpop.f32.mrf.mxu0
        %v487 = vadd.f32 0.0, %v486
        %488 = vdwg.mxu0
        %489 = vmatpush.msra.mxu0 0.0
        %490 = vmatpush.msra.mxu0 0.0
        %491 = vmatpush.msra.mxu0 0.0
        %492 = vmatpush.msra.mxu0 0.0
        %493 = vmatpush.msra.mxu0 0.0
        %494 = vmatpush.msra.mxu0 0.0
        %495 = vmatpush.msra.mxu0 0.0
        %496 = vmatpush.msra.mxu0 0.0
        %497 = vmatpush.msra.mxu0 0.0
        %498 = vmatpush.msra.mxu0 0.0
        %499 = vmatpush.msra.mxu0 0.0
        %500 = vmatpush.msra.mxu0 0.0
        %501 = vmatpush.msra.mxu0 0.0
        %502 = vmatpush.msra.mxu0 0.0
        %503 = vmatpush.msra.mxu0 %v228
        %504 = vmatpush.msra.mxu0 %v224
        %505 = vmatmul.f32.gmra.mxu0 %v247
        %v506 = vpop.f32.mrf.mxu0
        %v507 = vadd.f32 0.0, %v506
        %508 = vmatmul.f32.gmra.mxu0 %v250
        %v509 = vpop.f32.mrf.mxu0
        %v510 = vadd.f32 0.0, %v509
        %511 = vmatmul.f32.gmra.mxu0 %v253
        %v512 = vpop.f32.mrf.mxu0
        %v513 = vadd.f32 0.0, %v512
        %514 = vmatmul.f32.gmra.mxu0 %v256
        %v515 = vpop.f32.mrf.mxu0
        %v516 = vadd.f32 0.0, %v515
        %517 = vmatmul.f32.gmra.mxu0 %v259
        %v518 = vpop.f32.mrf.mxu0
        %v519 = vadd.f32 0.0, %v518
        %520 = vmatmul.f32.gmra.mxu0 %v262
        %v521 = vpop.f32.mrf.mxu0
        %v522 = vadd.f32 0.0, %v521
        %523 = vmatmul.f32.gmra.mxu0 %v265
        %v524 = vpop.f32.mrf.mxu0
        %v525 = vadd.f32 0.0, %v524
        %526 = vmatmul.f32.gmra.mxu0 %v268
        %v527 = vpop.f32.mrf.mxu0
        %v528 = vadd.f32 0.0, %v527
        %529 = vmatmul.f32.gmra.mxu0 %v271
        %v530 = vpop.f32.mrf.mxu0
        %v531 = vadd.f32 0.0, %v530
        %532 = vmatmul.f32.gmra.mxu0 %v274
        %v533 = vpop.f32.mrf.mxu0
        %v534 = vadd.f32 0.0, %v533
        %535 = vmatmul.f32.gmra.mxu0 %v277
        %v536 = vpop.f32.mrf.mxu0
        %v537 = vadd.f32 0.0, %v536
        %538 = vmatmul.f32.gmra.mxu0 %v280
        %v539 = vpop.f32.mrf.mxu0
        %v540 = vadd.f32 0.0, %v539
        %541 = vmatmul.f32.gmra.mxu0 %v283
        %v542 = vpop.f32.mrf.mxu0
        %v543 = vadd.f32 0.0, %v542
        %544 = vmatmul.f32.gmra.mxu0 %v286
        %v545 = vpop.f32.mrf.mxu0
        %v546 = vadd.f32 0.0, %v545
        %547 = vmatmul.f32.gmra.mxu0 %v289
        %v548 = vpop.f32.mrf.mxu0
        %v549 = vadd.f32 0.0, %v548
        %550 = vmatmul.f32.gmra.mxu0 %v292
        %v551 = vpop.f32.mrf.mxu0
        %v552 = vadd.f32 0.0, %v551
        %553 = vdwg.mxu0
        %v554 = vld [vmem:[%s217] sm:$0xf]
        %vm555 = vcmp.eq.s32.totalorder %v554, 0
        %v556 = vsel %vm555, 1, 0
        %v557 = vperm.slane %v556, 0
        %v558 = vperm.slane %v556, 1
        %v559 = vperm.slane %v556, 2
        %v560 = vperm.slane %v556, 3
        %vm561 = vcmp.eq.s32.totalorder %v557, 1
        %vm562 = vcmp.eq.s32.totalorder %v558, 1
        %vm563 = vcmp.eq.s32.totalorder %v559, 1
        %vm564 = vcmp.eq.s32.totalorder %v560, 1
        %v565 = vsel %vm561, %v312, 0.0
        %v566 = vsel %vm562, %v377, 0.0
        %v567 = vsel %vm563, %v442, 0.0
        %v568 = vsel %vm564, %v507, 0.0
        %v569 = vadd.f32 %v565, 0.0
        %v570 = vadd.f32 %v566, 0.0
        %v571 = vadd.f32 %v567, 0.0
        %v572 = vadd.f32 %v568, 0.0
        %vm573 = vcmp.eq.s32.totalorder %v554, 1
        %v574 = vsel %vm573, 1, 0
        %v575 = vperm.slane %v574, 0
        %v576 = vperm.slane %v574, 1
        %v577 = vperm.slane %v574, 2
        %v578 = vperm.slane %v574, 3
        %vm579 = vcmp.eq.s32.totalorder %v575, 1
        %vm580 = vcmp.eq.s32.totalorder %v576, 1
        %vm581 = vcmp.eq.s32.totalorder %v577, 1
        %vm582 = vcmp.eq.s32.totalorder %v578, 1
        %v583 = vsel %vm579, %v315, 0.0
        %v584 = vsel %vm580, %v380, 0.0
        %v585 = vsel %vm581, %v445, 0.0
        %v586 = vsel %vm582, %v510, 0.0
        %v587 = vadd.f32 %v569, %v583
        %v588 = vadd.f32 %v570, %v584
        %v589 = vadd.f32 %v571, %v585
        %v590 = vadd.f32 %v572, %v586
        %vm591 = vcmp.eq.s32.totalorder %v554, 2
        %v592 = vsel %vm591, 1, 0
        %v593 = vperm.slane %v592, 0
        %v594 = vperm.slane %v592, 1
        %v595 = vperm.slane %v592, 2
        %v596 = vperm.slane %v592, 3
        %vm597 = vcmp.eq.s32.totalorder %v593, 1
        %vm598 = vcmp.eq.s32.totalorder %v594, 1
        %vm599 = vcmp.eq.s32.totalorder %v595, 1
        %vm600 = vcmp.eq.s32.totalorder %v596, 1
        %v601 = vsel %vm597, %v318, 0.0
        %v602 = vsel %vm598, %v383, 0.0
        %v603 = vsel %vm599, %v448, 0.0
        %v604 = vsel %vm600, %v513, 0.0
        %v605 = vadd.f32 %v587, %v601
        %v606 = vadd.f32 %v588, %v602
        %v607 = vadd.f32 %v589, %v603
        %v608 = vadd.f32 %v590, %v604
        %vm609 = vcmp.eq.s32.totalorder %v554, 3
        %v610 = vsel %vm609, 1, 0
        %v611 = vperm.slane %v610, 0
        %v612 = vperm.slane %v610, 1
        %v613 = vperm.slane %v610, 2
        %v614 = vperm.slane %v610, 3
        %vm615 = vcmp.eq.s32.totalorder %v611, 1
        %vm616 = vcmp.eq.s32.totalorder %v612, 1
        %vm617 = vcmp.eq.s32.totalorder %v613, 1
        %vm618 = vcmp.eq.s32.totalorder %v614, 1
        %v619 = vsel %vm615, %v321, 0.0
        %v620 = vsel %vm616, %v386, 0.0
        %v621 = vsel %vm617, %v451, 0.0
        %v622 = vsel %vm618, %v516, 0.0
        %v623 = vadd.f32 %v605, %v619
        %v624 = vadd.f32 %v606, %v620
        %v625 = vadd.f32 %v607, %v621
        %v626 = vadd.f32 %v608, %v622
        %vm627 = vcmp.eq.s32.totalorder %v554, 4
        %v628 = vsel %vm627, 1, 0
        %v629 = vperm.slane %v628, 0
        %v630 = vperm.slane %v628, 1
        %v631 = vperm.slane %v628, 2
        %v632 = vperm.slane %v628, 3
        %vm633 = vcmp.eq.s32.totalorder %v629, 1
        %vm634 = vcmp.eq.s32.totalorder %v630, 1
        %vm635 = vcmp.eq.s32.totalorder %v631, 1
        %vm636 = vcmp.eq.s32.totalorder %v632, 1
        %v637 = vsel %vm633, %v324, 0.0
        %v638 = vsel %vm634, %v389, 0.0
        %v639 = vsel %vm635, %v454, 0.0
        %v640 = vsel %vm636, %v519, 0.0
        %v641 = vadd.f32 %v623, %v637
        %v642 = vadd.f32 %v624, %v638
        %v643 = vadd.f32 %v625, %v639
        %v644 = vadd.f32 %v626, %v640
        %vm645 = vcmp.eq.s32.totalorder %v554, 5
        %v646 = vsel %vm645, 1, 0
        %v647 = vperm.slane %v646, 0
        %v648 = vperm.slane %v646, 1
        %v649 = vperm.slane %v646, 2
        %v650 = vperm.slane %v646, 3
        %vm651 = vcmp.eq.s32.totalorder %v647, 1
        %vm652 = vcmp.eq.s32.totalorder %v648, 1
        %vm653 = vcmp.eq.s32.totalorder %v649, 1
        %vm654 = vcmp.eq.s32.totalorder %v650, 1
        %v655 = vsel %vm651, %v327, 0.0
        %v656 = vsel %vm652, %v392, 0.0
        %v657 = vsel %vm653, %v457, 0.0
        %v658 = vsel %vm654, %v522, 0.0
        %v659 = vadd.f32 %v641, %v655
        %v660 = vadd.f32 %v642, %v656
        %v661 = vadd.f32 %v643, %v657
        %v662 = vadd.f32 %v644, %v658
        %vm663 = vcmp.eq.s32.totalorder %v554, 6
        %v664 = vsel %vm663, 1, 0
        %v665 = vperm.slane %v664, 0
        %v666 = vperm.slane %v664, 1
        %v667 = vperm.slane %v664, 2
        %v668 = vperm.slane %v664, 3
        %vm669 = vcmp.eq.s32.totalorder %v665, 1
        %vm670 = vcmp.eq.s32.totalorder %v666, 1
        %vm671 = vcmp.eq.s32.totalorder %v667, 1
        %vm672 = vcmp.eq.s32.totalorder %v668, 1
        %v673 = vsel %vm669, %v330, 0.0
        %v674 = vsel %vm670, %v395, 0.0
        %v675 = vsel %vm671, %v460, 0.0
        %v676 = vsel %vm672, %v525, 0.0
        %v677 = vadd.f32 %v659, %v673
        %v678 = vadd.f32 %v660, %v674
        %v679 = vadd.f32 %v661, %v675
        %v680 = vadd.f32 %v662, %v676
        %vm681 = vcmp.eq.s32.totalorder %v554, 7
        %v682 = vsel %vm681, 1, 0
        %v683 = vperm.slane %v682, 0
        %v684 = vperm.slane %v682, 1
        %v685 = vperm.slane %v682, 2
        %v686 = vperm.slane %v682, 3
        %vm687 = vcmp.eq.s32.totalorder %v683, 1
        %vm688 = vcmp.eq.s32.totalorder %v684, 1
        %vm689 = vcmp.eq.s32.totalorder %v685, 1
        %vm690 = vcmp.eq.s32.totalorder %v686, 1
        %v691 = vsel %vm687, %v333, 0.0
        %v692 = vsel %vm688, %v398, 0.0
        %v693 = vsel %vm689, %v463, 0.0
        %v694 = vsel %vm690, %v528, 0.0
        %v695 = vadd.f32 %v677, %v691
        %v696 = vadd.f32 %v678, %v692
        %v697 = vadd.f32 %v679, %v693
        %v698 = vadd.f32 %v680, %v694
        %vm699 = vcmp.eq.s32.totalorder %v554, 8
        %v700 = vsel %vm699, 1, 0
        %v701 = vperm.slane %v700, 0
        %v702 = vperm.slane %v700, 1
        %v703 = vperm.slane %v700, 2
        %v704 = vperm.slane %v700, 3
        %vm705 = vcmp.eq.s32.totalorder %v701, 1
        %vm706 = vcmp.eq.s32.totalorder %v702, 1
        %vm707 = vcmp.eq.s32.totalorder %v703, 1
        %vm708 = vcmp.eq.s32.totalorder %v704, 1
        %v709 = vsel %vm705, %v336, 0.0
        %v710 = vsel %vm706, %v401, 0.0
        %v711 = vsel %vm707, %v466, 0.0
        %v712 = vsel %vm708, %v531, 0.0
        %v713 = vadd.f32 %v695, %v709
        %v714 = vadd.f32 %v696, %v710
        %v715 = vadd.f32 %v697, %v711
        %v716 = vadd.f32 %v698, %v712
        %vm717 = vcmp.eq.s32.totalorder %v554, 9
        %v718 = vsel %vm717, 1, 0
        %v719 = vperm.slane %v718, 0
        %v720 = vperm.slane %v718, 1
        %v721 = vperm.slane %v718, 2
        %v722 = vperm.slane %v718, 3
        %vm723 = vcmp.eq.s32.totalorder %v719, 1
        %vm724 = vcmp.eq.s32.totalorder %v720, 1
        %vm725 = vcmp.eq.s32.totalorder %v721, 1
        %vm726 = vcmp.eq.s32.totalorder %v722, 1
        %v727 = vsel %vm723, %v339, 0.0
        %v728 = vsel %vm724, %v404, 0.0
        %v729 = vsel %vm725, %v469, 0.0
        %v730 = vsel %vm726, %v534, 0.0
        %v731 = vadd.f32 %v713, %v727
        %v732 = vadd.f32 %v714, %v728
        %v733 = vadd.f32 %v715, %v729
        %v734 = vadd.f32 %v716, %v730
        %vm735 = vcmp.eq.s32.totalorder %v554, 10
        %v736 = vsel %vm735, 1, 0
        %v737 = vperm.slane %v736, 0
        %v738 = vperm.slane %v736, 1
        %v739 = vperm.slane %v736, 2
        %v740 = vperm.slane %v736, 3
        %vm741 = vcmp.eq.s32.totalorder %v737, 1
        %vm742 = vcmp.eq.s32.totalorder %v738, 1
        %vm743 = vcmp.eq.s32.totalorder %v739, 1
        %vm744 = vcmp.eq.s32.totalorder %v740, 1
        %v745 = vsel %vm741, %v342, 0.0
        %v746 = vsel %vm742, %v407, 0.0
        %v747 = vsel %vm743, %v472, 0.0
        %v748 = vsel %vm744, %v537, 0.0
        %v749 = vadd.f32 %v731, %v745
        %v750 = vadd.f32 %v732, %v746
        %v751 = vadd.f32 %v733, %v747
        %v752 = vadd.f32 %v734, %v748
        %vm753 = vcmp.eq.s32.totalorder %v554, 11
        %v754 = vsel %vm753, 1, 0
        %v755 = vperm.slane %v754, 0
        %v756 = vperm.slane %v754, 1
        %v757 = vperm.slane %v754, 2
        %v758 = vperm.slane %v754, 3
        %vm759 = vcmp.eq.s32.totalorder %v755, 1
        %vm760 = vcmp.eq.s32.totalorder %v756, 1
        %vm761 = vcmp.eq.s32.totalorder %v757, 1
        %vm762 = vcmp.eq.s32.totalorder %v758, 1
        %v763 = vsel %vm759, %v345, 0.0
        %v764 = vsel %vm760, %v410, 0.0
        %v765 = vsel %vm761, %v475, 0.0
        %v766 = vsel %vm762, %v540, 0.0
        %v767 = vadd.f32 %v749, %v763
        %v768 = vadd.f32 %v750, %v764
        %v769 = vadd.f32 %v751, %v765
        %v770 = vadd.f32 %v752, %v766
        %vm771 = vcmp.eq.s32.totalorder %v554, 12
        %v772 = vsel %vm771, 1, 0
        %v773 = vperm.slane %v772, 0
        %v774 = vperm.slane %v772, 1
        %v775 = vperm.slane %v772, 2
        %v776 = vperm.slane %v772, 3
        %vm777 = vcmp.eq.s32.totalorder %v773, 1
        %vm778 = vcmp.eq.s32.totalorder %v774, 1
        %vm779 = vcmp.eq.s32.totalorder %v775, 1
        %vm780 = vcmp.eq.s32.totalorder %v776, 1
        %v781 = vsel %vm777, %v348, 0.0
        %v782 = vsel %vm778, %v413, 0.0
        %v783 = vsel %vm779, %v478, 0.0
        %v784 = vsel %vm780, %v543, 0.0
        %v785 = vadd.f32 %v767, %v781
        %v786 = vadd.f32 %v768, %v782
        %v787 = vadd.f32 %v769, %v783
        %v788 = vadd.f32 %v770, %v784
        %vm789 = vcmp.eq.s32.totalorder %v554, 13
        %v790 = vsel %vm789, 1, 0
        %v791 = vperm.slane %v790, 0
        %v792 = vperm.slane %v790, 1
        %v793 = vperm.slane %v790, 2
        %v794 = vperm.slane %v790, 3
        %vm795 = vcmp.eq.s32.totalorder %v791, 1
        %vm796 = vcmp.eq.s32.totalorder %v792, 1
        %vm797 = vcmp.eq.s32.totalorder %v793, 1
        %vm798 = vcmp.eq.s32.totalorder %v794, 1
        %v799 = vsel %vm795, %v351, 0.0
        %v800 = vsel %vm796, %v416, 0.0
        %v801 = vsel %vm797, %v481, 0.0
        %v802 = vsel %vm798, %v546, 0.0
        %v803 = vadd.f32 %v785, %v799
        %v804 = vadd.f32 %v786, %v800
        %v805 = vadd.f32 %v787, %v801
        %v806 = vadd.f32 %v788, %v802
        %vm807 = vcmp.eq.s32.totalorder %v554, 14
        %v808 = vsel %vm807, 1, 0
        %v809 = vperm.slane %v808, 0
        %v810 = vperm.slane %v808, 1
        %v811 = vperm.slane %v808, 2
        %v812 = vperm.slane %v808, 3
        %vm813 = vcmp.eq.s32.totalorder %v809, 1
        %vm814 = vcmp.eq.s32.totalorder %v810, 1
        %vm815 = vcmp.eq.s32.totalorder %v811, 1
        %vm816 = vcmp.eq.s32.totalorder %v812, 1
        %v817 = vsel %vm813, %v354, 0.0
        %v818 = vsel %vm814, %v419, 0.0
        %v819 = vsel %vm815, %v484, 0.0
        %v820 = vsel %vm816, %v549, 0.0
        %v821 = vadd.f32 %v803, %v817
        %v822 = vadd.f32 %v804, %v818
        %v823 = vadd.f32 %v805, %v819
        %v824 = vadd.f32 %v806, %v820
        %vm825 = vcmp.eq.s32.totalorder %v554, 15
        %v826 = vsel %vm825, 1, 0
        %v827 = vperm.slane %v826, 0
        %v828 = vperm.slane %v826, 1
        %v829 = vperm.slane %v826, 2
        %v830 = vperm.slane %v826, 3
        %vm831 = vcmp.eq.s32.totalorder %v827, 1
        %vm832 = vcmp.eq.s32.totalorder %v828, 1
        %vm833 = vcmp.eq.s32.totalorder %v829, 1
        %vm834 = vcmp.eq.s32.totalorder %v830, 1
        %v835 = vsel %vm831, %v357, 0.0
        %v836 = vsel %vm832, %v422, 0.0
        %v837 = vsel %vm833, %v487, 0.0
        %v838 = vsel %vm834, %v552, 0.0
        %v839 = vadd.f32 %v821, %v835
        %v840 = vadd.f32 %v822, %v836
        %v841 = vadd.f32 %v823, %v837
        %v842 = vadd.f32 %v824, %v838
        %v843 = vpack.c.bf16 %v840, %v839
        %v844 = vpack.c.bf16 %v842, %v841
        %845 = vst [vmem:[%s212] sm:$0xff] %v843
        %846 = vst [vmem:[%s212 + $0x8] sm:$0xff] %v844
        %vm847 = vcmask 1040384
        %vm848 = vsmask.f32 256
        %vm849 = vmand %vm847, %vm848
        %vm850 = vcmask 1044484
        %vm851 = vsmask.f32 4352
        %vm852 = vmand %vm850, %vm851
        %vm853 = vmor %vm852, %vm849
        %v854 = vld [vmem:[%s212 + $0x10] sm:$0x11]
        %v855 = vsel %vm853, 1065369472, %v854
        %856 = vst [vmem:[%s212 + $0x10] sm:$0x11] %v855
        %v857 = vld [vmem:[%s212 + $0x18] sm:$0x11]
        %v858 = vsel %vm853, 1065369472, %v857
        %859 = vst [vmem:[%s212 + $0x18] sm:$0x11] %v858
        %s860 = sand.u32 %s95, 1
        %s861 = sand.u32 %s95, 1
        %s862 = smul.addr %s861, 32
        %s863 = scalar_lea.vmem [#allocation3], %s862
        // Predicated region
        $region56: #{to_bev_convolution.2} parent=50 // pred_check
          %p864 = pneg %p105
        $region57: #{to_bev_convolution.2} parent=50 // pred_check_branch
          %866 = sbr.rel (%p864) target = $region59
        $region58: #{to_bev_convolution.2} parent=50 // pred_region
          %s867 = smul.u32 4, %s14
          %s868 = smul.addr %s867, 4
          %s869 = scalar_lea.vmem %s3, %s868
          // Predicated region
          $region60: #{to_bev_convolution.2} parent=58 // pred_check
            _
          $region61: #{to_bev_convolution.2} parent=58 // pred_check_branch
            %871 = sbr.rel (0) target = $region63
          $region62: #{to_bev_convolution.2} parent=58 // pred_region
            // Predicated region
            $region64: #{to_bev_convolution.2} parent=62 // pred_check
              _
            $region65: #{to_bev_convolution.2} parent=62 // pred_check_branch
              %873 = sbr.rel (0) target = $region67
            $region66: #{to_bev_convolution.2} parent=62 // pred_region
              loop: start=0, step=1, limit=1
              $region68: #{to_bev_convolution.2} parent=66 // loop_pre_header
                _
              $region69: #{to_bev_convolution.2} parent=66 // loop_header
                %s875 = sphi 0, %s879
                %p876 = scmp.ge.s32.totalorder %s875, 1
                %s880 = sphi %s863, %s863
                %s881 = sphi %s869, %s869
              $region70: #{to_bev_convolution.2} parent=66 // loop_header_branch
                %878 = sbr.rel (%p876) target = $region74
              $region71: #{to_bev_convolution.2} parent=66 // loop_body
                %v882 = vld [vmem:[%s880] sm:$0xff]
                %883 = vst [vmem:[%s881] sm:$0xff] %v882
                %v884 = vld [vmem:[%s880 + $0x8] sm:$0xff]
                %885 = vst [vmem:[%s881 + $0x8] sm:$0xff] %v884
                %v886 = vld [vmem:[%s880 + $0x10] sm:$0xff]
                %887 = vst [vmem:[%s881 + $0x20] sm:$0xff] %v886
                %v888 = vld [vmem:[%s880 + $0x18] sm:$0xff]
                %889 = vst [vmem:[%s881 + $0x28] sm:$0xff] %v888
              $region72: #{to_bev_convolution.2} parent=66 // loop_footer
                %s879 = sadd.s32 1, %s875
              $region73: #{to_bev_convolution.2} parent=66 // loop_footer_branch
                %874 = sbr.rel target = $region69
              $region74: #{to_bev_convolution.2} parent=66 // loop_exit
                _
            $region67: #{to_bev_convolution.2} parent=62 // pred_fallthru
              _
            // Predicated region
            $region75: #{to_bev_convolution.2} parent=62 // pred_check
              _
            $region76: #{to_bev_convolution.2} parent=62 // pred_check_branch
              %891 = sbr.rel target = $region78
            $region77: #{to_bev_convolution.2} parent=62 // pred_region
              _
            $region78: #{to_bev_convolution.2} parent=62 // pred_fallthru
              _
          $region63: #{to_bev_convolution.2} parent=58 // pred_fallthru
            _
          %892 = vnop
        $region59: #{to_bev_convolution.2} parent=50 // pred_fallthru
          _
      $region51: #{to_bev_convolution.2} parent=5 // pred_fallthru
        _
      %p893 = scmp.le.s32.totalorder 2, %s9
      // Predicated region
      $region79: #{to_bev_convolution.2} parent=5 // pred_check
        %p894 = pneg %p893
      $region80: #{to_bev_convolution.2} parent=5 // pred_check_branch
        %896 = sbr.rel (%p894) target = $region82
      $region81: #{to_bev_convolution.2} parent=5 // pred_region
        %s897 = ssub.s32 %s9, 2
        // Predicated region
        $region83: #{to_bev_convolution.2} parent=81 // pred_check
          %p898 = pneg %p111
        $region84: #{to_bev_convolution.2} parent=81 // pred_check_branch
          %900 = sbr.rel (%p898) target = $region86
        $region85: #{to_bev_convolution.2} parent=81 // pred_region
          %s901 = sand.u32 %s96, 1
          %s902 = sand.u32 %s96, 1
          %s903 = smul.addr %s902, 32
          %s904 = scalar_lea.vmem [#allocation3], %s903
        $region86: #{to_bev_convolution.2} parent=81 // pred_fallthru
          _
      $region82: #{to_bev_convolution.2} parent=5 // pred_fallthru
        _
    $region6: #{to_bev_convolution.2} parent=1 // loop_footer
      %s13 = sadd.s32 1, %s9
    $region7: #{to_bev_convolution.2} parent=1 // loop_footer_branch
      %8 = sbr.rel target = $region3
    $region8: #{to_bev_convolution.2} parent=1 // loop_exit
      _

// kernel: to_bev_convolution.3
$region0: #{to_bev_convolution.3}
  #allocation0 [shape = 'u32[]', space=smem, size = 0x4, offset = 0x4, fixed_abs, tag = 'smem constant byte address 0x4 - core index']
  #allocation1 [shape = 'u32[72,128]{1,0:T(1,128)}', space=vmem, size = 0x9000, scoped, tag = 'internal scratch']
  %s0 = inlined_call_operand.vmem [shape: bf16[9,1024], index: 0, kind: input, shape index: {}]
  %s1 = inlined_call_operand.vmem [shape: s32[1024,1], index: 1, kind: input, shape index: {}]
  %s2 = inlined_call_operand.vmem [shape: f32[8,1], index: 2, kind: input, shape index: {}]
  %s3 = inlined_call_operand.hbm [shape: f32[8,512], index: 3, kind: output, shape index: {0}]
  %s4 = inlined_call_operand.hbm [shape: f32[1,512], index: 4, kind: output, shape index: {1}]
  %5 = xla_tuple %s3, %s4
  %s6 = sld [smem:[#allocation0]]
  $region84: #{to_bev_convolution.3} parent=0
    _
  %s8 = ssub.s32 1, %s6
  %s9 = scalar_select 0, %s8, %s6
  $region1: #{to_bev_convolution.3} parent=0
    #allocation2 [shape = 'u8[32768]{0}', space=vmem, size = 0x8000, scoped, tag = 'input window, operand 0']
    #allocation3 [shape = 'u8[16384]{0}', space=vmem, size = 0x4000, scoped, tag = 'output window, operand 0']
    #allocation4 [shape = 's32[2]{0}', space=sflag, size = 0x8, scoped, tag = 'scoped memory for to_bev_convolution.3']
    #allocation5 [shape = 'u8[2048]{0}', space=vmem, size = 0x800, scoped, tag = 'output window, operand 1']
    #allocation6 [shape = 's32[2]{0}', space=sflag, size = 0x8, scoped, tag = 'scoped memory for to_bev_convolution.3']
    %10 = vsyncpa [#allocation4], 0
    %s11 = scalar_lea.sflag [#allocation4], 1
    %12 = vsyncpa %s11, 0
    %13 = vsyncpa [#allocation6], 0
    %s14 = scalar_lea.sflag [#allocation6], 1
    %15 = vsyncpa %s14, 0
    loop: start=0, step=1, limit=6
    $region2: #{to_bev_convolution.3} parent=1 // loop_pre_header
      _
    $region3: #{to_bev_convolution.3} parent=1 // loop_header
      %s17 = sphi 0, %s21
      %p18 = scmp.ge.s32.totalorder %s17, 6
      %s24 = sphi 0, %s36
      %s25 = sphi 0, %s32
      %s26 = sphi 0, %s24
      %s27 = sphi 0, %s25
      %s28 = sphi 0, %s26
      %s29 = sphi 0, %s27
      %s39 = sphi 0, %s41
      %s42 = sphi 0, %s39
      %s43 = sphi 0, %s42
      %s59 = sphi 0, %s43
      %s65 = sphi 0, %s67
      %s68 = sphi 0, %s65
      %s69 = sphi 0, %s68
      %s85 = sphi 0, %s69
      %s89 = sphi 0, %s89
      %s91 = sphi 0, %s89
      %s92 = sphi 0, %s91
      %s106 = sphi 0, %s92
      %s112 = sphi 0, %s114
      %s115 = sphi 0, %s112
      %s116 = sphi 0, %s115
      %s132 = sphi 0, %s116
      %s138 = sphi 0, %s140
      %s141 = sphi 0, %s138
      %s142 = sphi 0, %s141
      %s158 = sphi 0, %s142
    $region4: #{to_bev_convolution.3} parent=1 // loop_header_branch
      %20 = sbr.rel (%p18) target = $region8
    $region5: #{to_bev_convolution.3} parent=1 // loop_body
      %s22 = ssub.s32 %s17, 1
      %s23 = ssub.s32 %s17, 2
      %s30 = sadd.s32 1, %s25
      %p31 = scmp.ge.s32.totalorder %s30, 2
      %s32 = scalar_select %p31, 0, %s30
      %s33 = sadd.s32 1, %s24
      %s34 = scalar_select %p31, %s33, %s24
      %p35 = scmp.ge.s32.totalorder %s34, 2
      %s36 = scalar_select %p35, 0, %s34
      %s37 = ssub.s32 %s25, %s32
      %p38 = scmp.eq.s32.totalorder %s37, 0
      %s40 = sadd.s32 %s39, 1
      %s41 = scalar_select %p38, %s39, %s40
      %p44 = pneg %p38
      %p45 = scmp.eq.s32.totalorder %s17, 3
      %p46 = por %p44, %p45
      %p47 = scmp.ne.s32.totalorder %s39, %s42
      %p48 = scmp.eq.s32.totalorder %s17, 0
      %p49 = por %p47, %p48
      %p50 = scmp.ne.s32.totalorder %s39, %s42
      %p51 = scmp.eq.s32.totalorder %s22, 3
      %p52 = por %p50, %p51
      %p53 = scmp.ne.s32.totalorder %s42, %s43
      %p54 = scmp.eq.s32.totalorder %s22, 0
      %p55 = por %p53, %p54
      %p56 = scmp.ne.s32.totalorder %s42, %s43
      %p57 = scmp.eq.s32.totalorder %s23, 3
      %p58 = por %p56, %p57
      %p60 = scmp.ne.s32.totalorder %s43, %s59
      %p61 = scmp.eq.s32.totalorder %s23, 0
      %p62 = por %p60, %p61
      %s63 = ssub.s32 %s25, %s32
      %p64 = scmp.eq.s32.totalorder %s63, 0
      %s66 = sadd.s32 %s65, 1
      %s67 = scalar_select %p64, %s65, %s66
      %p70 = pneg %p64
      %p71 = scmp.eq.s32.totalorder %s17, 3
      %p72 = por %p70, %p71
      %p73 = scmp.ne.s32.totalorder %s65, %s68
      %p74 = scmp.eq.s32.totalorder %s17, 0
      %p75 = por %p73, %p74
      %p76 = scmp.ne.s32.totalorder %s65, %s68
      %p77 = scmp.eq.s32.totalorder %s22, 3
      %p78 = por %p76, %p77
      %p79 = scmp.ne.s32.totalorder %s68, %s69
      %p80 = scmp.eq.s32.totalorder %s22, 0
      %p81 = por %p79, %p80
      %p82 = scmp.ne.s32.totalorder %s68, %s69
      %p83 = scmp.eq.s32.totalorder %s23, 3
      %p84 = por %p82, %p83
      %p86 = scmp.ne.s32.totalorder %s69, %s85
      %p87 = scmp.eq.s32.totalorder %s23, 0
      %p88 = por %p86, %p87
      %s90 = sadd.s32 %s89, 1
      %p93 = scmp.eq.s32.totalorder %s17, 3
      %p94 = scmp.ne.s32.totalorder %s89, %s91
      %p95 = scmp.eq.s32.totalorder %s17, 0
      %p96 = por %p94, %p95
      %p97 = scmp.ne.s32.totalorder %s89, %s91
      %p98 = scmp.eq.s32.totalorder %s22, 3
      %p99 = por %p97, %p98
      %p100 = scmp.ne.s32.totalorder %s91, %s92
      %p101 = scmp.eq.s32.totalorder %s22, 0
      %p102 = por %p100, %p101
      %p103 = scmp.ne.s32.totalorder %s91, %s92
      %p104 = scmp.eq.s32.totalorder %s23, 3
      %p105 = por %p103, %p104
      %p107 = scmp.ne.s32.totalorder %s92, %s106
      %p108 = scmp.eq.s32.totalorder %s23, 0
      %p109 = por %p107, %p108
      %s110 = ssub.s32 %s24, %s36
      %p111 = scmp.eq.s32.totalorder %s110, 0
      %s113 = sadd.s32 %s112, 1
      %s114 = scalar_select %p111, %s112, %s113
      %p117 = pneg %p111
      %p118 = scmp.eq.s32.totalorder %s17, 3
      %p119 = por %p117, %p118
      %p120 = scmp.ne.s32.totalorder %s112, %s115
      %p121 = scmp.eq.s32.totalorder %s17, 0
      %p122 = por %p120, %p121
      %p123 = scmp.ne.s32.totalorder %s112, %s115
      %p124 = scmp.eq.s32.totalorder %s22, 3
      %p125 = por %p123, %p124
      %p126 = scmp.ne.s32.totalorder %s115, %s116
      %p127 = scmp.eq.s32.totalorder %s22, 0
      %p128 = por %p126, %p127
      %p129 = scmp.ne.s32.totalorder %s115, %s116
      %p130 = scmp.eq.s32.totalorder %s23, 3
      %p131 = por %p129, %p130
      %p133 = scmp.ne.s32.totalorder %s116, %s132
      %p134 = scmp.eq.s32.totalorder %s23, 0
      %p135 = por %p133, %p134
      %s136 = ssub.s32 %s24, %s36
      %p137 = scmp.eq.s32.totalorder %s136, 0
      %s139 = sadd.s32 %s138, 1
      %s140 = scalar_select %p137, %s138, %s139
      %p143 = pneg %p137
      %p144 = scmp.eq.s32.totalorder %s17, 3
      %p145 = por %p143, %p144
      %p146 = scmp.ne.s32.totalorder %s138, %s141
      %p147 = scmp.eq.s32.totalorder %s17, 0
      %p148 = por %p146, %p147
      %p149 = scmp.ne.s32.totalorder %s138, %s141
      %p150 = scmp.eq.s32.totalorder %s22, 3
      %p151 = por %p149, %p150
      %p152 = scmp.ne.s32.totalorder %s141, %s142
      %p153 = scmp.eq.s32.totalorder %s22, 0
      %p154 = por %p152, %p153
      %p155 = scmp.ne.s32.totalorder %s141, %s142
      %p156 = scmp.eq.s32.totalorder %s23, 3
      %p157 = por %p155, %p156
      %p159 = scmp.ne.s32.totalorder %s142, %s158
      %p160 = scmp.eq.s32.totalorder %s23, 0
      %p161 = por %p159, %p160
      %p162 = scmp.le.s32.totalorder 1, %s17
      %p163 = scmp.lt.s32.totalorder %s17, 5
      %p164 = pnand %p162, %p163
      %p165 = pneg %p164
      // Predicated region
      $region9: #{to_bev_convolution.3} parent=5 // pred_check
        _
      $region10: #{to_bev_convolution.3} parent=5 // pred_check_branch
        %167 = sbr.rel (%p164) target = $region12
      $region11: #{to_bev_convolution.3} parent=5 // pred_region
        %s168 = ssub.s32 %s17, 1
        // Predicated region
        $region13: #{to_bev_convolution.3} parent=11 // pred_check
          %p169 = pneg %p102
        $region14: #{to_bev_convolution.3} parent=11 // pred_check_branch
          %171 = sbr.rel (%p169) target = $region16
        $region15: #{to_bev_convolution.3} parent=11 // pred_region
          _
        $region16: #{to_bev_convolution.3} parent=11 // pred_fallthru
          _
      $region12: #{to_bev_convolution.3} parent=5 // pred_fallthru
        _
      %p172 = scmp.lt.s32.totalorder %s17, 4
      // Predicated region
      $region17: #{to_bev_convolution.3} parent=5 // pred_check
        %p173 = pneg %p172
      $region18: #{to_bev_convolution.3} parent=5 // pred_check_branch
        %175 = sbr.rel (%p173) target = $region20
      $region19: #{to_bev_convolution.3} parent=5 // pred_region
        // Predicated region
        $region21: #{to_bev_convolution.3} parent=19 // pred_check
          %p176 = pneg %p49
        $region22: #{to_bev_convolution.3} parent=19 // pred_check_branch
          %178 = sbr.rel (%p176) target = $region24
        $region23: #{to_bev_convolution.3} parent=19 // pred_region
          %s179 = sand.u32 %s39, 1
          %s180 = sand.u32 %s39, 1
          %s181 = smul.addr %s180, 32
          %s182 = scalar_lea.vmem [#allocation2], %s181
          %s183 = smul.u32 4, %s25
          %s184 = smul.addr %s183, 4
          %s185 = scalar_lea.vmem %s0, %s184
          // Predicated region
          $region25: #{to_bev_convolution.3} parent=23 // pred_check
            _
          $region26: #{to_bev_convolution.3} parent=23 // pred_check_branch
            %187 = sbr.rel (0) target = $region28
          $region27: #{to_bev_convolution.3} parent=23 // pred_region
            // Predicated region
            $region29: #{to_bev_convolution.3} parent=27 // pred_check
              _
            $region30: #{to_bev_convolution.3} parent=27 // pred_check_branch
              %189 = sbr.rel (0) target = $region32
            $region31: #{to_bev_convolution.3} parent=27 // pred_region
              loop: start=0, step=1, limit=1
              $region33: #{to_bev_convolution.3} parent=31 // loop_pre_header
                _
              $region34: #{to_bev_convolution.3} parent=31 // loop_header
                %s191 = sphi 0, %s195
                %p192 = scmp.ge.s32.totalorder %s191, 1
                %s196 = sphi %s185, %s185
                %s197 = sphi %s182, %s182
              $region35: #{to_bev_convolution.3} parent=31 // loop_header_branch
                %194 = sbr.rel (%p192) target = $region39
              $region36: #{to_bev_convolution.3} parent=31 // loop_body
                %v198 = vld [vmem:[%s196] sm:$0xff]
                %199 = vst [vmem:[%s197] sm:$0xff] %v198
                %v200 = vld [vmem:[%s196 + $0x8] sm:$0xff]
                %201 = vst [vmem:[%s197 + $0x8] sm:$0xff] %v200
                %v202 = vld [vmem:[%s196 + $0x20] sm:$0xff]
                %203 = vst [vmem:[%s197 + $0x10] sm:$0xff] %v202
                %v204 = vld [vmem:[%s196 + $0x28] sm:$0xff]
                %205 = vst [vmem:[%s197 + $0x18] sm:$0xff] %v204
              $region37: #{to_bev_convolution.3} parent=31 // loop_footer
                %s195 = sadd.s32 1, %s191
              $region38: #{to_bev_convolution.3} parent=31 // loop_footer_branch
                %190 = sbr.rel target = $region34
              $region39: #{to_bev_convolution.3} parent=31 // loop_exit
                _
            $region32: #{to_bev_convolution.3} parent=27 // pred_fallthru
              _
            // Predicated region
            $region40: #{to_bev_convolution.3} parent=27 // pred_check
              _
            $region41: #{to_bev_convolution.3} parent=27 // pred_check_branch
              %207 = sbr.rel target = $region43
            $region42: #{to_bev_convolution.3} parent=27 // pred_region
              _
            $region43: #{to_bev_convolution.3} parent=27 // pred_fallthru
              _
          $region28: #{to_bev_convolution.3} parent=23 // pred_fallthru
            _
          %208 = vnop
        $region24: #{to_bev_convolution.3} parent=19 // pred_fallthru
          _
        // Predicated region
        $region44: #{to_bev_convolution.3} parent=19 // pred_check
          %p209 = pneg %p75
        $region45: #{to_bev_convolution.3} parent=19 // pred_check_branch
          %211 = sbr.rel (%p209) target = $region47
        $region46: #{to_bev_convolution.3} parent=19 // pred_region
          %s212 = smul.u32 64, %s25
          %p213 = scmp.lt.s32.totalorder %s212, 127
          %s214 = scalar_select %p213, %s212, 127
          %s215 = smul.addr %s214, 8
          %s216 = scalar_lea.vmem %s1, %s215
          %s217 = smul.u32 64, %s25
        $region47: #{to_bev_convolution.3} parent=19 // pred_fallthru
          _
      $region20: #{to_bev_convolution.3} parent=5 // pred_fallthru
        _
      %p218 = scmp.le.s32.totalorder 1, %s17
      %p219 = scmp.lt.s32.totalorder %s17, 5
      %p220 = pnand %p218, %p219
      %p221 = pneg %p220
      // Predicated region
      $region48: #{to_bev_convolution.3} parent=5 // pred_check
        _
      $region49: #{to_bev_convolution.3} parent=5 // pred_check_branch
        %223 = sbr.rel (%p220) target = $region51
      $region50: #{to_bev_convolution.3} parent=5 // pred_region
        %s224 = ssub.s32 %s17, 1
        %s225 = sand.u32 %s42, 1
        %s226 = sand.u32 %s42, 1
        %s227 = smul.addr %s226, 32
        %s228 = scalar_lea.vmem [#allocation2], %s227
        // Predicated region
        $region52: #{to_bev_convolution.3} parent=50 // pred_check
          %p229 = pneg %p55
        $region53: #{to_bev_convolution.3} parent=50 // pred_check_branch
          %231 = sbr.rel (%p229) target = $region55
        $region54: #{to_bev_convolution.3} parent=50 // pred_region
          _
        $region55: #{to_bev_convolution.3} parent=50 // pred_fallthru
          _
        %s232 = sand.u32 %s42, 1
        %s233 = sand.u32 %s42, 1
        %s234 = smul.addr %s233, 32
        %s235 = scalar_lea.vmem [#allocation2], %s234
        %p236 = pneg %p55
        %p237 = pneg %p52
        %s238 = smul.u32 64, %s27
        %p239 = scmp.lt.s32.totalorder %s238, 127
        %s240 = scalar_select %p239, %s238, 127
        %s241 = smul.addr %s240, 8
        %s242 = scalar_lea.vmem %s1, %s241
        %p243 = pneg %p81
        %p244 = pneg %p78
        %p245 = pneg %p102
        %p246 = pneg %p99
        %p247 = pneg %p128
        %p248 = pneg %p125
        %s249 = sand.u32 %s115, 1
        %s250 = scalar_lea.sflag [#allocation4], %s249
        %s251 = sand.u32 %s115, 1
        %s252 = smul.addr %s251, 16
        %s253 = scalar_lea.vmem [#allocation3], %s252
        %p254 = pneg %p154
        %p255 = pneg %p151
        %s256 = sand.u32 %s141, 1
        %s257 = scalar_lea.sflag [#allocation6], %s256
        %s258 = sand.u32 %s141, 1
        %s259 = smul.addr %s258, 2
        %s260 = scalar_lea.vmem [#allocation5], %s259
        %s261 = smul.u32 4, %s27
        %s262 = smul.u32 64, %s27
        %p263 = scmp.lt.s32.totalorder %s262, 127
        %s264 = scalar_select %p263, %s262, 127
        %s265 = smul.addr %s264, 8
        %s266 = scalar_lea.vmem %s1, %s265
        %s267 = smul.u32 64, %s27
        %s268 = smul.u32 2, %s26
        %s269 = smul.u32 2, %s26
        %p270 = scmp.eq.s32.totalorder %s27, 0
        // Predicated region
        $region56: #{to_bev_convolution.3} parent=50 // pred_check
          %p271 = pneg %p270
        $region57: #{to_bev_convolution.3} parent=50 // pred_check_branch
          %273 = sbr.rel (%p271) target = $region59
        $region58: #{to_bev_convolution.3} parent=50 // pred_region
          %274 = vst [vmem:[%s253] sm:$0xff] 0.0
          %275 = vst [vmem:[%s253 + $0x8] sm:$0xff] 0.0
          %v276 = vlaneseq
          %vm277 = vcmp.ge.s32.totalorder %v276, 0
          %vm278 = vcmp.lt.s32.totalorder %v276, 256
          %vm279 = vmand %vm277, %vm278
          %280 = vst.msk [vmem:[%s260] sm:$0x3] %vm279, 0.0
        $region59: #{to_bev_convolution.3} parent=50 // pred_fallthru
          _
        %s281 = smul.u32 %s26, 256
        %v282 = vlaneseq
        %v283 = vand.u32 %v282, 127
        %v284 = vadd.s32 %v283, 128
        %v285 = vstv %s281
        %v286 = vadd.s32 %v283, %v285
        %v287 = vadd.s32 %v284, %v285
        %v288 = vld [vmem:[%s266] sm:$0xff]
        %v289 = vld [vmem:[%s266 + $0x8] sm:$0xff]
        %v290 = vld [vmem:[%s266 + $0x10] sm:$0xff]
        %v291 = vld [vmem:[%s266 + $0x18] sm:$0xff]
        %v292 = vld [vmem:[%s266 + $0x20] sm:$0xff]
        %v293 = vld [vmem:[%s266 + $0x28] sm:$0xff]
        %v294 = vld [vmem:[%s266 + $0x30] sm:$0xff]
        %v295 = vld [vmem:[%s266 + $0x38] sm:$0xff]
        %v296 = vld [vmem:[%s266 + $0x40] sm:$0xff]
        %v297 = vld [vmem:[%s266 + $0x48] sm:$0xff]
        %v298 = vld [vmem:[%s266 + $0x50] sm:$0xff]
        %v299 = vld [vmem:[%s266 + $0x58] sm:$0xff]
        %v300 = vld [vmem:[%s266 + $0x60] sm:$0xff]
        %v301 = vld [vmem:[%s266 + $0x68] sm:$0xff]
        %v302 = vld [vmem:[%s266 + $0x70] sm:$0xff]
        %v303 = vld [vmem:[%s266 + $0x78] sm:$0xff]
        %v304 = vld [vmem:[%s266 + $0x80] sm:$0xff]
        %v305 = vld [vmem:[%s266 + $0x88] sm:$0xff]
        %v306 = vld [vmem:[%s266 + $0x90] sm:$0xff]
        %v307 = vld [vmem:[%s266 + $0x98] sm:$0xff]
        %v308 = vld [vmem:[%s266 + $0xa0] sm:$0xff]
        %v309 = vld [vmem:[%s266 + $0xa8] sm:$0xff]
        %v310 = vld [vmem:[%s266 + $0xb0] sm:$0xff]
        %v311 = vld [vmem:[%s266 + $0xb8] sm:$0xff]
        %v312 = vld [vmem:[%s266 + $0xc0] sm:$0xff]
        %v313 = vld [vmem:[%s266 + $0xc8] sm:$0xff]
        %v314 = vld [vmem:[%s266 + $0xd0] sm:$0xff]
        %v315 = vld [vmem:[%s266 + $0xd8] sm:$0xff]
        %v316 = vld [vmem:[%s266 + $0xe0] sm:$0xff]
        %v317 = vld [vmem:[%s266 + $0xe8] sm:$0xff]
        %v318 = vld [vmem:[%s266 + $0xf0] sm:$0xff]
        %v319 = vld [vmem:[%s266 + $0xf8] sm:$0xff]
        %v320 = vld [vmem:[%s266 + $0x100] sm:$0xff]
        %v321 = vld [vmem:[%s266 + $0x108] sm:$0xff]
        %v322 = vld [vmem:[%s266 + $0x110] sm:$0xff]
        %v323 = vld [vmem:[%s266 + $0x118] sm:$0xff]
        %v324 = vld [vmem:[%s266 + $0x120] sm:$0xff]
        %v325 = vld [vmem:[%s266 + $0x128] sm:$0xff]
        %v326 = vld [vmem:[%s266 + $0x130] sm:$0xff]
        %v327 = vld [vmem:[%s266 + $0x138] sm:$0xff]
        %v328 = vld [vmem:[%s266 + $0x140] sm:$0xff]
        %v329 = vld [vmem:[%s266 + $0x148] sm:$0xff]
        %v330 = vld [vmem:[%s266 + $0x150] sm:$0xff]
        %v331 = vld [vmem:[%s266 + $0x158] sm:$0xff]
        %v332 = vld [vmem:[%s266 + $0x160] sm:$0xff]
        %v333 = vld [vmem:[%s266 + $0x168] sm:$0xff]
        %v334 = vld [vmem:[%s266 + $0x170] sm:$0xff]
        %v335 = vld [vmem:[%s266 + $0x178] sm:$0xff]
        %v336 = vld [vmem:[%s266 + $0x180] sm:$0xff]
        %v337 = vld [vmem:[%s266 + $0x188] sm:$0xff]
        %v338 = vld [vmem:[%s266 + $0x190] sm:$0xff]
        %v339 = vld [vmem:[%s266 + $0x198] sm:$0xff]
        %v340 = vld [vmem:[%s266 + $0x1a0] sm:$0xff]
        %v341 = vld [vmem:[%s266 + $0x1a8] sm:$0xff]
        %v342 = vld [vmem:[%s266 + $0x1b0] sm:$0xff]
        %v343 = vld [vmem:[%s266 + $0x1b8] sm:$0xff]
        %v344 = vld [vmem:[%s266 + $0x1c0] sm:$0xff]
        %v345 = vld [vmem:[%s266 + $0x1c8] sm:$0xff]
        %v346 = vld [vmem:[%s266 + $0x1d0] sm:$0xff]
        %v347 = vld [vmem:[%s266 + $0x1d8] sm:$0xff]
        %v348 = vld [vmem:[%s266 + $0x1e0] sm:$0xff]
        %v349 = vld [vmem:[%s266 + $0x1e8] sm:$0xff]
        %v350 = vld [vmem:[%s266 + $0x1f0] sm:$0xff]
        %v351 = vld [vmem:[%s266 + $0x1f8] sm:$0xff]
        %352 = vset.pattern.permute.xlu0 0
        %353 = vperm.xlu0 %352, %v288
        %v354 = vpop.permute.xlu0 %353
        %355 = vset.pattern.permute.xlu0 0
        %356 = vperm.xlu0 %355, %v289
        %v357 = vpop.permute.xlu0 %356
        %358 = vset.pattern.permute.xlu0 0
        %359 = vperm.xlu0 %358, %v290
        %v360 = vpop.permute.xlu0 %359
        %361 = vset.pattern.permute.xlu0 0
        %362 = vperm.xlu0 %361, %v291
        %v363 = vpop.permute.xlu0 %362
        %364 = vset.pattern.permute.xlu0 0
        %365 = vperm.xlu0 %364, %v292
        %v366 = vpop.permute.xlu0 %365
        %367 = vset.pattern.permute.xlu0 0
        %368 = vperm.xlu0 %367, %v293
        %v369 = vpop.permute.xlu0 %368
        %370 = vset.pattern.permute.xlu0 0
        %371 = vperm.xlu0 %370, %v294
        %v372 = vpop.permute.xlu0 %371
        %373 = vset.pattern.permute.xlu0 0
        %374 = vperm.xlu0 %373, %v295
        %v375 = vpop.permute.xlu0 %374
        %376 = vset.pattern.permute.xlu0 0
        %377 = vperm.xlu0 %376, %v296
        %v378 = vpop.permute.xlu0 %377
        %379 = vset.pattern.permute.xlu0 0
        %380 = vperm.xlu0 %379, %v297
        %v381 = vpop.permute.xlu0 %380
        %382 = vset.pattern.permute.xlu0 0
        %383 = vperm.xlu0 %382, %v298
        %v384 = vpop.permute.xlu0 %383
        %385 = vset.pattern.permute.xlu0 0
        %386 = vperm.xlu0 %385, %v299
        %v387 = vpop.permute.xlu0 %386
        %388 = vset.pattern.permute.xlu0 0
        %389 = vperm.xlu0 %388, %v300
        %v390 = vpop.permute.xlu0 %389
        %391 = vset.pattern.permute.xlu0 0
        %392 = vperm.xlu0 %391, %v301
        %v393 = vpop.permute.xlu0 %392
        %394 = vset.pattern.permute.xlu0 0
        %395 = vperm.xlu0 %394, %v302
        %v396 = vpop.permute.xlu0 %395
        %397 = vset.pattern.permute.xlu0 0
        %398 = vperm.xlu0 %397, %v303
        %v399 = vpop.permute.xlu0 %398
        %400 = vset.pattern.permute.xlu0 0
        %401 = vperm.xlu0 %400, %v304
        %v402 = vpop.permute.xlu0 %401
        %403 = vset.pattern.permute.xlu0 0
        %404 = vperm.xlu0 %403, %v305
        %v405 = vpop.permute.xlu0 %404
        %406 = vset.pattern.permute.xlu0 0
        %407 = vperm.xlu0 %406, %v306
        %v408 = vpop.permute.xlu0 %407
        %409 = vset.pattern.permute.xlu0 0
        %410 = vperm.xlu0 %409, %v307
        %v411 = vpop.permute.xlu0 %410
        %412 = vset.pattern.permute.xlu0 0
        %413 = vperm.xlu0 %412, %v308
        %v414 = vpop.permute.xlu0 %413
        %415 = vset.pattern.permute.xlu0 0
        %416 = vperm.xlu0 %415, %v309
        %v417 = vpop.permute.xlu0 %416
        %418 = vset.pattern.permute.xlu0 0
        %419 = vperm.xlu0 %418, %v310
        %v420 = vpop.permute.xlu0 %419
        %421 = vset.pattern.permute.xlu0 0
        %422 = vperm.xlu0 %421, %v311
        %v423 = vpop.permute.xlu0 %422
        %424 = vset.pattern.permute.xlu0 0
        %425 = vperm.xlu0 %424, %v312
        %v426 = vpop.permute.xlu0 %425
        %427 = vset.pattern.permute.xlu0 0
        %428 = vperm.xlu0 %427, %v313
        %v429 = vpop.permute.xlu0 %428
        %430 = vset.pattern.permute.xlu0 0
        %431 = vperm.xlu0 %430, %v314
        %v432 = vpop.permute.xlu0 %431
        %433 = vset.pattern.permute.xlu0 0
        %434 = vperm.xlu0 %433, %v315
        %v435 = vpop.permute.xlu0 %434
        %436 = vset.pattern.permute.xlu0 0
        %437 = vperm.xlu0 %436, %v316
        %v438 = vpop.permute.xlu0 %437
        %439 = vset.pattern.permute.xlu0 0
        %440 = vperm.xlu0 %439, %v317
        %v441 = vpop.permute.xlu0 %440
        %442 = vset.pattern.permute.xlu0 0
        %443 = vperm.xlu0 %442, %v318
        %v444 = vpop.permute.xlu0 %443
        %445 = vset.pattern.permute.xlu0 0
        %446 = vperm.xlu0 %445, %v319
        %v447 = vpop.permute.xlu0 %446
        %448 = vset.pattern.permute.xlu0 0
        %449 = vperm.xlu0 %448, %v320
        %v450 = vpop.permute.xlu0 %449
        %451 = vset.pattern.permute.xlu0 0
        %452 = vperm.xlu0 %451, %v321
        %v453 = vpop.permute.xlu0 %452
        %454 = vset.pattern.permute.xlu0 0
        %455 = vperm.xlu0 %454, %v322
        %v456 = vpop.permute.xlu0 %455
        %457 = vset.pattern.permute.xlu0 0
        %458 = vperm.xlu0 %457, %v323
        %v459 = vpop.permute.xlu0 %458
        %460 = vset.pattern.permute.xlu0 0
        %461 = vperm.xlu0 %460, %v324
        %v462 = vpop.permute.xlu0 %461
        %463 = vset.pattern.permute.xlu0 0
        %464 = vperm.xlu0 %463, %v325
        %v465 = vpop.permute.xlu0 %464
        %466 = vset.pattern.permute.xlu0 0
        %467 = vperm.xlu0 %466, %v326
        %v468 = vpop.permute.xlu0 %467
        %469 = vset.pattern.permute.xlu0 0
        %470 = vperm.xlu0 %469, %v327
        %v471 = vpop.permute.xlu0 %470
        %472 = vset.pattern.permute.xlu0 0
        %473 = vperm.xlu0 %472, %v328
        %v474 = vpop.permute.xlu0 %473
        %475 = vset.pattern.permute.xlu0 0
        %476 = vperm.xlu0 %475, %v329
        %v477 = vpop.permute.xlu0 %476
        %478 = vset.pattern.permute.xlu0 0
        %479 = vperm.xlu0 %478, %v330
        %v480 = vpop.permute.xlu0 %479
        %481 = vset.pattern.permute.xlu0 0
        %482 = vperm.xlu0 %481, %v331
        %v483 = vpop.permute.xlu0 %482
        %484 = vset.pattern.permute.xlu0 0
        %485 = vperm.xlu0 %484, %v332
        %v486 = vpop.permute.xlu0 %485
        %487 = vset.pattern.permute.xlu0 0
        %488 = vperm.xlu0 %487, %v333
        %v489 = vpop.permute.xlu0 %488
        %490 = vset.pattern.permute.xlu0 0
        %491 = vperm.xlu0 %490, %v334
        %v492 = vpop.permute.xlu0 %491
        %493 = vset.pattern.permute.xlu0 0
        %494 = vperm.xlu0 %493, %v335
        %v495 = vpop.permute.xlu0 %494
        %496 = vset.pattern.permute.xlu0 0
        %497 = vperm.xlu0 %496, %v336
        %v498 = vpop.permute.xlu0 %497
        %499 = vset.pattern.permute.xlu0 0
        %500 = vperm.xlu0 %499, %v337
        %v501 = vpop.permute.xlu0 %500
        %502 = vset.pattern.permute.xlu0 0
        %503 = vperm.xlu0 %502, %v338
        %v504 = vpop.permute.xlu0 %503
        %505 = vset.pattern.permute.xlu0 0
        %506 = vperm.xlu0 %505, %v339
        %v507 = vpop.permute.xlu0 %506
        %508 = vset.pattern.permute.xlu0 0
        %509 = vperm.xlu0 %508, %v340
        %v510 = vpop.permute.xlu0 %509
        %511 = vset.pattern.permute.xlu0 0
        %512 = vperm.xlu0 %511, %v341
        %v513 = vpop.permute.xlu0 %512
        %514 = vset.pattern.permute.xlu0 0
        %515 = vperm.xlu0 %514, %v342
        %v516 = vpop.permute.xlu0 %515
        %517 = vset.pattern.permute.xlu0 0
        %518 = vperm.xlu0 %517, %v343
        %v519 = vpop.permute.xlu0 %518
        %520 = vset.pattern.permute.xlu0 0
        %521 = vperm.xlu0 %520, %v344
        %v522 = vpop.permute.xlu0 %521
        %523 = vset.pattern.permute.xlu0 0
        %524 = vperm.xlu0 %523, %v345
        %v525 = vpop.permute.xlu0 %524
        %526 = vset.pattern.permute.xlu0 0
        %527 = vperm.xlu0 %526, %v346
        %v528 = vpop.permute.xlu0 %527
        %529 = vset.pattern.permute.xlu0 0
        %530 = vperm.xlu0 %529, %v347
        %v531 = vpop.permute.xlu0 %530
        %532 = vset.pattern.permute.xlu0 0
        %533 = vperm.xlu0 %532, %v348
        %v534 = vpop.permute.xlu0 %533
        %535 = vset.pattern.permute.xlu0 0
        %536 = vperm.xlu0 %535, %v349
        %v537 = vpop.permute.xlu0 %536
        %538 = vset.pattern.permute.xlu0 0
        %539 = vperm.xlu0 %538, %v350
        %v540 = vpop.permute.xlu0 %539
        %541 = vset.pattern.permute.xlu0 0
        %542 = vperm.xlu0 %541, %v351
        %v543 = vpop.permute.xlu0 %542
        %vm544 = vcmp.eq.s32.totalorder %v354, %v286
        %vm545 = vcmp.eq.s32.totalorder %v354, %v287
        %vm546 = vcmp.eq.s32.totalorder %v357, %v286
        %vm547 = vcmp.eq.s32.totalorder %v357, %v287
        %vm548 = vcmp.eq.s32.totalorder %v360, %v286
        %vm549 = vcmp.eq.s32.totalorder %v360, %v287
        %vm550 = vcmp.eq.s32.totalorder %v363, %v286
        %vm551 = vcmp.eq.s32.totalorder %v363, %v287
        %vm552 = vcmp.eq.s32.totalorder %v366, %v286
        %vm553 = vcmp.eq.s32.totalorder %v366, %v287
        %vm554 = vcmp.eq.s32.totalorder %v369, %v286
        %vm555 = vcmp.eq.s32.totalorder %v369, %v287
        %vm556 = vcmp.eq.s32.totalorder %v372, %v286
        %vm557 = vcmp.eq.s32.totalorder %v372, %v287
        %vm558 = vcmp.eq.s32.totalorder %v375, %v286
        %vm559 = vcmp.eq.s32.totalorder %v375, %v287
        %vm560 = vcmp.eq.s32.totalorder %v378, %v286
        %vm561 = vcmp.eq.s32.totalorder %v378, %v287
        %vm562 = vcmp.eq.s32.totalorder %v381, %v286
        %vm563 = vcmp.eq.s32.totalorder %v381, %v287
        %vm564 = vcmp.eq.s32.totalorder %v384, %v286
        %vm565 = vcmp.eq.s32.totalorder %v384, %v287
        %vm566 = vcmp.eq.s32.totalorder %v387, %v286
        %vm567 = vcmp.eq.s32.totalorder %v387, %v287
        %vm568 = vcmp.eq.s32.totalorder %v390, %v286
        %vm569 = vcmp.eq.s32.totalorder %v390, %v287
        %vm570 = vcmp.eq.s32.totalorder %v393, %v286
        %vm571 = vcmp.eq.s32.totalorder %v393, %v287
        %vm572 = vcmp.eq.s32.totalorder %v396, %v286
        %vm573 = vcmp.eq.s32.totalorder %v396, %v287
        %vm574 = vcmp.eq.s32.totalorder %v399, %v286
        %vm575 = vcmp.eq.s32.totalorder %v399, %v287
        %vm576 = vcmp.eq.s32.totalorder %v402, %v286
        %vm577 = vcmp.eq.s32.totalorder %v402, %v287
        %vm578 = vcmp.eq.s32.totalorder %v405, %v286
        %vm579 = vcmp.eq.s32.totalorder %v405, %v287
        %vm580 = vcmp.eq.s32.totalorder %v408, %v286
        %vm581 = vcmp.eq.s32.totalorder %v408, %v287
        %vm582 = vcmp.eq.s32.totalorder %v411, %v286
        %vm583 = vcmp.eq.s32.totalorder %v411, %v287
        %vm584 = vcmp.eq.s32.totalorder %v414, %v286
        %vm585 = vcmp.eq.s32.totalorder %v414, %v287
        %vm586 = vcmp.eq.s32.totalorder %v417, %v286
        %vm587 = vcmp.eq.s32.totalorder %v417, %v287
        %vm588 = vcmp.eq.s32.totalorder %v420, %v286
        %vm589 = vcmp.eq.s32.totalorder %v420, %v287
        %vm590 = vcmp.eq.s32.totalorder %v423, %v286
        %vm591 = vcmp.eq.s32.totalorder %v423, %v287
        %vm592 = vcmp.eq.s32.totalorder %v426, %v286
        %vm593 = vcmp.eq.s32.totalorder %v426, %v287
        %vm594 = vcmp.eq.s32.totalorder %v429, %v286
        %vm595 = vcmp.eq.s32.totalorder %v429, %v287
        %vm596 = vcmp.eq.s32.totalorder %v432, %v286
        %vm597 = vcmp.eq.s32.totalorder %v432, %v287
        %vm598 = vcmp.eq.s32.totalorder %v435, %v286
        %vm599 = vcmp.eq.s32.totalorder %v435, %v287
        %vm600 = vcmp.eq.s32.totalorder %v438, %v286
        %vm601 = vcmp.eq.s32.totalorder %v438, %v287
        %vm602 = vcmp.eq.s32.totalorder %v441, %v286
        %vm603 = vcmp.eq.s32.totalorder %v441, %v287
        %vm604 = vcmp.eq.s32.totalorder %v444, %v286
        %vm605 = vcmp.eq.s32.totalorder %v444, %v287
        %vm606 = vcmp.eq.s32.totalorder %v447, %v286
        %vm607 = vcmp.eq.s32.totalorder %v447, %v287
        %vm608 = vcmp.eq.s32.totalorder %v450, %v286
        %vm609 = vcmp.eq.s32.totalorder %v450, %v287
        %vm610 = vcmp.eq.s32.totalorder %v453, %v286
        %vm611 = vcmp.eq.s32.totalorder %v453, %v287
        %vm612 = vcmp.eq.s32.totalorder %v456, %v286
        %vm613 = vcmp.eq.s32.totalorder %v456, %v287
        %vm614 = vcmp.eq.s32.totalorder %v459, %v286
        %vm615 = vcmp.eq.s32.totalorder %v459, %v287
        %vm616 = vcmp.eq.s32.totalorder %v462, %v286
        %vm617 = vcmp.eq.s32.totalorder %v462, %v287
        %vm618 = vcmp.eq.s32.totalorder %v465, %v286
        %vm619 = vcmp.eq.s32.totalorder %v465, %v287
        %vm620 = vcmp.eq.s32.totalorder %v468, %v286
        %vm621 = vcmp.eq.s32.totalorder %v468, %v287
        %vm622 = vcmp.eq.s32.totalorder %v471, %v286
        %vm623 = vcmp.eq.s32.totalorder %v471, %v287
        %vm624 = vcmp.eq.s32.totalorder %v474, %v286
        %vm625 = vcmp.eq.s32.totalorder %v474, %v287
        %vm626 = vcmp.eq.s32.totalorder %v477, %v286
        %vm627 = vcmp.eq.s32.totalorder %v477, %v287
        %vm628 = vcmp.eq.s32.totalorder %v480, %v286
        %vm629 = vcmp.eq.s32.totalorder %v480, %v287
        %vm630 = vcmp.eq.s32.totalorder %v483, %v286
        %vm631 = vcmp.eq.s32.totalorder %v483, %v287
        %vm632 = vcmp.eq.s32.totalorder %v486, %v286
        %vm633 = vcmp.eq.s32.totalorder %v486, %v287
        %vm634 = vcmp.eq.s32.totalorder %v489, %v286
        %vm635 = vcmp.eq.s32.totalorder %v489, %v287
        %vm636 = vcmp.eq.s32.totalorder %v492, %v286
        %vm637 = vcmp.eq.s32.totalorder %v492, %v287
        %vm638 = vcmp.eq.s32.totalorder %v495, %v286
        %vm639 = vcmp.eq.s32.totalorder %v495, %v287
        %vm640 = vcmp.eq.s32.totalorder %v498, %v286
        %vm641 = vcmp.eq.s32.totalorder %v498, %v287
        %vm642 = vcmp.eq.s32.totalorder %v501, %v286
        %vm643 = vcmp.eq.s32.totalorder %v501, %v287
        %vm644 = vcmp.eq.s32.totalorder %v504, %v286
        %vm645 = vcmp.eq.s32.totalorder %v504, %v287
        %vm646 = vcmp.eq.s32.totalorder %v507, %v286
        %vm647 = vcmp.eq.s32.totalorder %v507, %v287
        %vm648 = vcmp.eq.s32.totalorder %v510, %v286
        %vm649 = vcmp.eq.s32.totalorder %v510, %v287
        %vm650 = vcmp.eq.s32.totalorder %v513, %v286
        %vm651 = vcmp.eq.s32.totalorder %v513, %v287
        %vm652 = vcmp.eq.s32.totalorder %v516, %v286
        %vm653 = vcmp.eq.s32.totalorder %v516, %v287
        %vm654 = vcmp.eq.s32.totalorder %v519, %v286
        %vm655 = vcmp.eq.s32.totalorder %v519, %v287
        %vm656 = vcmp.eq.s32.totalorder %v522, %v286
        %vm657 = vcmp.eq.s32.totalorder %v522, %v287
        %vm658 = vcmp.eq.s32.totalorder %v525, %v286
        %vm659 = vcmp.eq.s32.totalorder %v525, %v287
        %vm660 = vcmp.eq.s32.totalorder %v528, %v286
        %vm661 = vcmp.eq.s32.totalorder %v528, %v287
        %vm662 = vcmp.eq.s32.totalorder %v531, %v286
        %vm663 = vcmp.eq.s32.totalorder %v531, %v287
        %vm664 = vcmp.eq.s32.totalorder %v534, %v286
        %vm665 = vcmp.eq.s32.totalorder %v534, %v287
        %vm666 = vcmp.eq.s32.totalorder %v537, %v286
        %vm667 = vcmp.eq.s32.totalorder %v537, %v287
        %vm668 = vcmp.eq.s32.totalorder %v540, %v286
        %vm669 = vcmp.eq.s32.totalorder %v540, %v287
        %vm670 = vcmp.eq.s32.totalorder %v543, %v286
        %vm671 = vcmp.eq.s32.totalorder %v543, %v287
        %v672 = vsel %vm544, 1, 0
        %v673 = vsel %vm545, 1, 0
        %v674 = vsel %vm546, 1, 0
        %v675 = vsel %vm547, 1, 0
        %v676 = vsel %vm548, 1, 0
        %v677 = vsel %vm549, 1, 0
        %v678 = vsel %vm550, 1, 0
        %v679 = vsel %vm551, 1, 0
        %v680 = vsel %vm552, 1, 0
        %v681 = vsel %vm553, 1, 0
        %v682 = vsel %vm554, 1, 0
        %v683 = vsel %vm555, 1, 0
        %v684 = vsel %vm556, 1, 0
        %v685 = vsel %vm557, 1, 0
        %v686 = vsel %vm558, 1, 0
        %v687 = vsel %vm559, 1, 0
        %v688 = vsel %vm560, 1, 0
        %v689 = vsel %vm561, 1, 0
        %v690 = vsel %vm562, 1, 0
        %v691 = vsel %vm563, 1, 0
        %v692 = vsel %vm564, 1, 0
        %v693 = vsel %vm565, 1, 0
        %v694 = vsel %vm566, 1, 0
        %v695 = vsel %vm567, 1, 0
        %v696 = vsel %vm568, 1, 0
        %v697 = vsel %vm569, 1, 0
        %v698 = vsel %vm570, 1, 0
        %v699 = vsel %vm571, 1, 0
        %v700 = vsel %vm572, 1, 0
        %v701 = vsel %vm573, 1, 0
        %v702 = vsel %vm574, 1, 0
        %v703 = vsel %vm575, 1, 0
        %v704 = vsel %vm576, 1, 0
        %v705 = vsel %vm577, 1, 0
        %v706 = vsel %vm578, 1, 0
        %v707 = vsel %vm579, 1, 0
        %v708 = vsel %vm580, 1, 0
        %v709 = vsel %vm581, 1, 0
        %v710 = vsel %vm582, 1, 0
        %v711 = vsel %vm583, 1, 0
        %v712 = vsel %vm584, 1, 0
        %v713 = vsel %vm585, 1, 0
        %v714 = vsel %vm586, 1, 0
        %v715 = vsel %vm587, 1, 0
        %v716 = vsel %vm588, 1, 0
        %v717 = vsel %vm589, 1, 0
        %v718 = vsel %vm590, 1, 0
        %v719 = vsel %vm591, 1, 0
        %v720 = vsel %vm592, 1, 0
        %v721 = vsel %vm593, 1, 0
        %v722 = vsel %vm594, 1, 0
        %v723 = vsel %vm595, 1, 0
        %v724 = vsel %vm596, 1, 0
        %v725 = vsel %vm597, 1, 0
        %v726 = vsel %vm598, 1, 0
        %v727 = vsel %vm599, 1, 0
        %v728 = vsel %vm600, 1, 0
        %v729 = vsel %vm601, 1, 0
        %v730 = vsel %vm602, 1, 0
        %v731 = vsel %vm603, 1, 0
        %v732 = vsel %vm604, 1, 0
        %v733 = vsel %vm605, 1, 0
        %v734 = vsel %vm606, 1, 0
        %v735 = vsel %vm607, 1, 0
        %v736 = vsel %vm608, 1, 0
        %v737 = vsel %vm609, 1, 0
        %v738 = vsel %vm610, 1, 0
        %v739 = vsel %vm611, 1, 0
        %v740 = vsel %vm612, 1, 0
        %v741 = vsel %vm613, 1, 0
        %v742 = vsel %vm614, 1, 0
        %v743 = vsel %vm615, 1, 0
        %v744 = vsel %vm616, 1, 0
        %v745 = vsel %vm617, 1, 0
        %v746 = vsel %vm618, 1, 0
        %v747 = vsel %vm619, 1, 0
        %v748 = vsel %vm620, 1, 0
        %v749 = vsel %vm621, 1, 0
        %v750 = vsel %vm622, 1, 0
        %v751 = vsel %vm623, 1, 0
        %v752 = vsel %vm624, 1, 0
        %v753 = vsel %vm625, 1, 0
        %v754 = vsel %vm626, 1, 0
        %v755 = vsel %vm627, 1, 0
        %v756 = vsel %vm628, 1, 0
        %v757 = vsel %vm629, 1, 0
        %v758 = vsel %vm630, 1, 0
        %v759 = vsel %vm631, 1, 0
        %v760 = vsel %vm632, 1, 0
        %v761 = vsel %vm633, 1, 0
        %v762 = vsel %vm634, 1, 0
        %v763 = vsel %vm635, 1, 0
        %v764 = vsel %vm636, 1, 0
        %v765 = vsel %vm637, 1, 0
        %v766 = vsel %vm638, 1, 0
        %v767 = vsel %vm639, 1, 0
        %v768 = vsel %vm640, 1, 0
        %v769 = vsel %vm641, 1, 0
        %v770 = vsel %vm642, 1, 0
        %v771 = vsel %vm643, 1, 0
        %v772 = vsel %vm644, 1, 0
        %v773 = vsel %vm645, 1, 0
        %v774 = vsel %vm646, 1, 0
        %v775 = vsel %vm647, 1, 0
        %v776 = vsel %vm648, 1, 0
        %v777 = vsel %vm649, 1, 0
        %v778 = vsel %vm650, 1, 0
        %v779 = vsel %vm651, 1, 0
        %v780 = vsel %vm652, 1, 0
        %v781 = vsel %vm653, 1, 0
        %v782 = vsel %vm654, 1, 0
        %v783 = vsel %vm655, 1, 0
        %v784 = vsel %vm656, 1, 0
        %v785 = vsel %vm657, 1, 0
        %v786 = vsel %vm658, 1, 0
        %v787 = vsel %vm659, 1, 0
        %v788 = vsel %vm660, 1, 0
        %v789 = vsel %vm661, 1, 0
        %v790 = vsel %vm662, 1, 0
        %v791 = vsel %vm663, 1, 0
        %v792 = vsel %vm664, 1, 0
        %v793 = vsel %vm665, 1, 0
        %v794 = vsel %vm666, 1, 0
        %v795 = vsel %vm667, 1, 0
        %v796 = vsel %vm668, 1, 0
        %v797 = vsel %vm669, 1, 0
        %v798 = vsel %vm670, 1, 0
        %v799 = vsel %vm671, 1, 0
        %v800 = vcvt.s32.f32 %v672
        %v801 = vcvt.s32.f32 %v673
        %v802 = vcvt.s32.f32 %v674
        %v803 = vcvt.s32.f32 %v675
        %v804 = vcvt.s32.f32 %v676
        %v805 = vcvt.s32.f32 %v677
        %v806 = vcvt.s32.f32 %v678
        %v807 = vcvt.s32.f32 %v679
        %v808 = vcvt.s32.f32 %v680
        %v809 = vcvt.s32.f32 %v681
        %v810 = vcvt.s32.f32 %v682
        %v811 = vcvt.s32.f32 %v683
        %v812 = vcvt.s32.f32 %v684
        %v813 = vcvt.s32.f32 %v685
        %v814 = vcvt.s32.f32 %v686
        %v815 = vcvt.s32.f32 %v687
        %v816 = vcvt.s32.f32 %v688
        %v817 = vcvt.s32.f32 %v689
        %v818 = vcvt.s32.f32 %v690
        %v819 = vcvt.s32.f32 %v691
        %v820 = vcvt.s32.f32 %v692
        %v821 = vcvt.s32.f32 %v693
        %v822 = vcvt.s32.f32 %v694
        %v823 = vcvt.s32.f32 %v695
        %v824 = vcvt.s32.f32 %v696
        %v825 = vcvt.s32.f32 %v697
        %v826 = vcvt.s32.f32 %v698
        %v827 = vcvt.s32.f32 %v699
        %v828 = vcvt.s32.f32 %v700
        %v829 = vcvt.s32.f32 %v701
        %v830 = vcvt.s32.f32 %v702
        %v831 = vcvt.s32.f32 %v703
        %v832 = vcvt.s32.f32 %v704
        %v833 = vcvt.s32.f32 %v705
        %v834 = vcvt.s32.f32 %v706
        %v835 = vcvt.s32.f32 %v707
        %v836 = vcvt.s32.f32 %v708
        %v837 = vcvt.s32.f32 %v709
        %v838 = vcvt.s32.f32 %v710
        %v839 = vcvt.s32.f32 %v711
        %v840 = vcvt.s32.f32 %v712
        %v841 = vcvt.s32.f32 %v713
        %v842 = vcvt.s32.f32 %v714
        %v843 = vcvt.s32.f32 %v715
        %v844 = vcvt.s32.f32 %v716
        %v845 = vcvt.s32.f32 %v717
        %v846 = vcvt.s32.f32 %v718
        %v847 = vcvt.s32.f32 %v719
        %v848 = vcvt.s32.f32 %v720
        %v849 = vcvt.s32.f32 %v721
        %v850 = vcvt.s32.f32 %v722
        %v851 = vcvt.s32.f32 %v723
        %v852 = vcvt.s32.f32 %v724
        %v853 = vcvt.s32.f32 %v725
        %v854 = vcvt.s32.f32 %v726
        %v855 = vcvt.s32.f32 %v727
        %v856 = vcvt.s32.f32 %v728
        %v857 = vcvt.s32.f32 %v729
        %v858 = vcvt.s32.f32 %v730
        %v859 = vcvt.s32.f32 %v731
        %v860 = vcvt.s32.f32 %v732
        %v861 = vcvt.s32.f32 %v733
        %v862 = vcvt.s32.f32 %v734
        %v863 = vcvt.s32.f32 %v735
        %v864 = vcvt.s32.f32 %v736
        %v865 = vcvt.s32.f32 %v737
        %v866 = vcvt.s32.f32 %v738
        %v867 = vcvt.s32.f32 %v739
        %v868 = vcvt.s32.f32 %v740
        %v869 = vcvt.s32.f32 %v741
        %v870 = vcvt.s32.f32 %v742
        %v871 = vcvt.s32.f32 %v743
        %v872 = vcvt.s32.f32 %v744
        %v873 = vcvt.s32.f32 %v745
        %v874 = vcvt.s32.f32 %v746
        %v875 = vcvt.s32.f32 %v747
        %v876 = vcvt.s32.f32 %v748
        %v877 = vcvt.s32.f32 %v749
        %v878 = vcvt.s32.f32 %v750
        %v879 = vcvt.s32.f32 %v751
        %v880 = vcvt.s32.f32 %v752
        %v881 = vcvt.s32.f32 %v753
        %v882 = vcvt.s32.f32 %v754
        %v883 = vcvt.s32.f32 %v755
        %v884 = vcvt.s32.f32 %v756
        %v885 = vcvt.s32.f32 %v757
        %v886 = vcvt.s32.f32 %v758
        %v887 = vcvt.s32.f32 %v759
        %v888 = vcvt.s32.f32 %v760
        %v889 = vcvt.s32.f32 %v761
        %v890 = vcvt.s32.f32 %v762
        %v891 = vcvt.s32.f32 %v763
        %v892 = vcvt.s32.f32 %v764
        %v893 = vcvt.s32.f32 %v765
        %v894 = vcvt.s32.f32 %v766
        %v895 = vcvt.s32.f32 %v767
        %v896 = vcvt.s32.f32 %v768
        %v897 = vcvt.s32.f32 %v769
        %v898 = vcvt.s32.f32 %v770
        %v899 = vcvt.s32.f32 %v771
        %v900 = vcvt.s32.f32 %v772
        %v901 = vcvt.s32.f32 %v773
        %v902 = vcvt.s32.f32 %v774
        %v903 = vcvt.s32.f32 %v775
        %v904 = vcvt.s32.f32 %v776
        %v905 = vcvt.s32.f32 %v777
        %v906 = vcvt.s32.f32 %v778
        %v907 = vcvt.s32.f32 %v779
        %v908 = vcvt.s32.f32 %v780
        %v909 = vcvt.s32.f32 %v781
        %v910 = vcvt.s32.f32 %v782
        %v911 = vcvt.s32.f32 %v783
        %v912 = vcvt.s32.f32 %v784
        %v913 = vcvt.s32.f32 %v785
        %v914 = vcvt.s32.f32 %v786
        %v915 = vcvt.s32.f32 %v787
        %v916 = vcvt.s32.f32 %v788
        %v917 = vcvt.s32.f32 %v789
        %v918 = vcvt.s32.f32 %v790
        %v919 = vcvt.s32.f32 %v791
        %v920 = vcvt.s32.f32 %v792
        %v921 = vcvt.s32.f32 %v793
        %v922 = vcvt.s32.f32 %v794
        %v923 = vcvt.s32.f32 %v795
        %v924 = vcvt.s32.f32 %v796
        %v925 = vcvt.s32.f32 %v797
        %v926 = vcvt.s32.f32 %v798
        %v927 = vcvt.s32.f32 %v799
        %v928 = vpack.c.bf16 %v802, %v800
        %v929 = vpack.c.bf16 %v803, %v801
        %v930 = vpack.c.bf16 %v806, %v804
        %v931 = vpack.c.bf16 %v807, %v805
        %v932 = vpack.c.bf16 %v810, %v808
        %v933 = vpack.c.bf16 %v811, %v809
        %v934 = vpack.c.bf16 %v814, %v812
        %v935 = vpack.c.bf16 %v815, %v813
        %v936 = vpack.c.bf16 %v818, %v816
        %v937 = vpack.c.bf16 %v819, %v817
        %v938 = vpack.c.bf16 %v822, %v820
        %v939 = vpack.c.bf16 %v823, %v821
        %v940 = vpack.c.bf16 %v826, %v824
        %v941 = vpack.c.bf16 %v827, %v825
        %v942 = vpack.c.bf16 %v830, %v828
        %v943 = vpack.c.bf16 %v831, %v829
        %v944 = vpack.c.bf16 %v834, %v832
        %v945 = vpack.c.bf16 %v835, %v833
        %v946 = vpack.c.bf16 %v838, %v836
        %v947 = vpack.c.bf16 %v839, %v837
        %v948 = vpack.c.bf16 %v842, %v840
        %v949 = vpack.c.bf16 %v843, %v841
        %v950 = vpack.c.bf16 %v846, %v844
        %v951 = vpack.c.bf16 %v847, %v845
        %v952 = vpack.c.bf16 %v850, %v848
        %v953 = vpack.c.bf16 %v851, %v849
        %v954 = vpack.c.bf16 %v854, %v852
        %v955 = vpack.c.bf16 %v855, %v853
        %v956 = vpack.c.bf16 %v858, %v856
        %v957 = vpack.c.bf16 %v859, %v857
        %v958 = vpack.c.bf16 %v862, %v860
        %v959 = vpack.c.bf16 %v863, %v861
        %v960 = vpack.c.bf16 %v866, %v864
        %v961 = vpack.c.bf16 %v867, %v865
        %v962 = vpack.c.bf16 %v870, %v868
        %v963 = vpack.c.bf16 %v871, %v869
        %v964 = vpack.c.bf16 %v874, %v872
        %v965 = vpack.c.bf16 %v875, %v873
        %v966 = vpack.c.bf16 %v878, %v876
        %v967 = vpack.c.bf16 %v879, %v877
        %v968 = vpack.c.bf16 %v882, %v880
        %v969 = vpack.c.bf16 %v883, %v881
        %v970 = vpack.c.bf16 %v886, %v884
        %v971 = vpack.c.bf16 %v887, %v885
        %v972 = vpack.c.bf16 %v890, %v888
        %v973 = vpack.c.bf16 %v891, %v889
        %v974 = vpack.c.bf16 %v894, %v892
        %v975 = vpack.c.bf16 %v895, %v893
        %v976 = vpack.c.bf16 %v898, %v896
        %v977 = vpack.c.bf16 %v899, %v897
        %v978 = vpack.c.bf16 %v902, %v900
        %v979 = vpack.c.bf16 %v903, %v901
        %v980 = vpack.c.bf16 %v906, %v904
        %v981 = vpack.c.bf16 %v907, %v905
        %v982 = vpack.c.bf16 %v910, %v908
        %v983 = vpack.c.bf16 %v911, %v909
        %v984 = vpack.c.bf16 %v914, %v912
        %v985 = vpack.c.bf16 %v915, %v913
        %v986 = vpack.c.bf16 %v918, %v916
        %v987 = vpack.c.bf16 %v919, %v917
        %v988 = vpack.c.bf16 %v922, %v920
        %v989 = vpack.c.bf16 %v923, %v921
        %v990 = vpack.c.bf16 %v926, %v924
        %v991 = vpack.c.bf16 %v927, %v925
        %v992 = vld [vmem:[%s228] sm:$0xff]
        %v993 = vld [vmem:[%s228 + $0x8] sm:$0xff]
        %v994 = vld [vmem:[%s228 + $0x10] sm:$0x11]
        %v995 = vld [vmem:[%s228 + $0x18] sm:$0x11]
        %v1000 = vunpack.c.l.b16 %v992
        %v1001 = vunpack.c.h.b16 %v992
        %v1002 = vunpack.c.l.b16 %v993
        %v1003 = vunpack.c.h.b16 %v993
        %v1004 = vunpack.c.l.b16 %v994
        %v1005 = vunpack.c.h.b16 %v994
        %v1006 = vunpack.c.l.b16 %v995
        %v1007 = vunpack.c.h.b16 %v995
        %v1008 = vpack.c.b16 %v1004, %v1000
        %v1009 = vpack.c.b16 %v1005, %v1001
        %v1010 = vpack.c.b16 %v1006, %v1002
        %v1011 = vpack.c.b16 %v1007, %v1003
        %1016 = vmatpush.bf16.msra.mxu0 %v942
        %1017 = vmatpush.bf16.msra.mxu0 %v940
        %1018 = vmatpush.bf16.msra.mxu0 %v938
        %1019 = vmatpush.bf16.msra.mxu0 %v936
        %1020 = vmatpush.bf16.msra.mxu0 %v934
        %1021 = vmatpush.bf16.msra.mxu0 %v932
        %1022 = vmatpush.bf16.msra.mxu0 %v930
        %1023 = vmatpush.bf16.msra.mxu0 %v928
        %1024 = vmatmul.bf16.gmra.mxu0 %v1008
        %v1025 = vpop.f32.mrf.mxu0
        %v1026 = vadd.f32 0.0, %v1025
        %v1027 = vpop.f32.mrf.mxu0
        %v1028 = vadd.f32 0.0, %v1027
        %1029 = vdwg.mxu0
        %1030 = vmatpush.bf16.msra.mxu0 %v958
        %1031 = vmatpush.bf16.msra.mxu0 %v956
        %1032 = vmatpush.bf16.msra.mxu0 %v954
        %1033 = vmatpush.bf16.msra.mxu0 %v952
        %1034 = vmatpush.bf16.msra.mxu0 %v950
        %1035 = vmatpush.bf16.msra.mxu0 %v948
        %1036 = vmatpush.bf16.msra.mxu0 %v946
        %1037 = vmatpush.bf16.msra.mxu0 %v944
        %1038 = vmatmul.bf16.gmra.mxu0 %v1009
        %v1039 = vpop.f32.mrf.mxu0
        %v1040 = vadd.f32 %v1026, %v1039
        %v1041 = vpop.f32.mrf.mxu0
        %v1042 = vadd.f32 %v1028, %v1041
        %1043 = vdwg.mxu0
        %1044 = vmatpush.bf16.msra.mxu0 %v974
        %1045 = vmatpush.bf16.msra.mxu0 %v972
        %1046 = vmatpush.bf16.msra.mxu0 %v970
        %1047 = vmatpush.bf16.msra.mxu0 %v968
        %1048 = vmatpush.bf16.msra.mxu0 %v966
        %1049 = vmatpush.bf16.msra.mxu0 %v964
        %1050 = vmatpush.bf16.msra.mxu0 %v962
        %1051 = vmatpush.bf16.msra.mxu0 %v960
        %1052 = vmatmul.bf16.gmra.mxu0 %v1010
        %v1053 = vpop.f32.mrf.mxu0
        %v1054 = vadd.f32 %v1040, %v1053
        %v1055 = vpop.f32.mrf.mxu0
        %v1056 = vadd.f32 %v1042, %v1055
        %1057 = vdwg.mxu0
        %1058 = vmatpush.bf16.msra.mxu0 %v990
        %1059 = vmatpush.bf16.msra.mxu0 %v988
        %1060 = vmatpush.bf16.msra.mxu0 %v986
        %1061 = vmatpush.bf16.msra.mxu0 %v984
        %1062 = vmatpush.bf16.msra.mxu0 %v982
        %1063 = vmatpush.bf16.msra.mxu0 %v980
        %1064 = vmatpush.bf16.msra.mxu0 %v978
        %1065 = vmatpush.bf16.msra.mxu0 %v976
        %1066 = vmatmul.bf16.gmra.mxu0 %v1011
        %v1067 = vpop.f32.mrf.mxu0
        %v1068 = vadd.f32 %v1054, %v1067
        %v1069 = vpop.f32.mrf.mxu0
        %v1070 = vadd.f32 %v1056, %v1069
        %1071 = vdwg.mxu0
        %1072 = vmatpush.bf16.msra.mxu0 %v943
        %1073 = vmatpush.bf16.msra.mxu0 %v941
        %1074 = vmatpush.bf16.msra.mxu0 %v939
        %1075 = vmatpush.bf16.msra.mxu0 %v937
        %1076 = vmatpush.bf16.msra.mxu0 %v935
        %1077 = vmatpush.bf16.msra.mxu0 %v933
        %1078 = vmatpush.bf16.msra.mxu0 %v931
        %1079 = vmatpush.bf16.msra.mxu0 %v929
        %1080 = vmatmul.bf16.gmra.mxu0 %v1008
        %v1081 = vpop.f32.mrf.mxu0
        %v1082 = vadd.f32 0.0, %v1081
        %v1083 = vpop.f32.mrf.mxu0
        %v1084 = vadd.f32 0.0, %v1083
        %1085 = vdwg.mxu0
        %1086 = vmatpush.bf16.msra.mxu0 %v959
        %1087 = vmatpush.bf16.msra.mxu0 %v957
        %1088 = vmatpush.bf16.msra.mxu0 %v955
        %1089 = vmatpush.bf16.msra.mxu0 %v953
        %1090 = vmatpush.bf16.msra.mxu0 %v951
        %1091 = vmatpush.bf16.msra.mxu0 %v949
        %1092 = vmatpush.bf16.msra.mxu0 %v947
        %1093 = vmatpush.bf16.msra.mxu0 %v945
        %1094 = vmatmul.bf16.gmra.mxu0 %v1009
        %v1095 = vpop.f32.mrf.mxu0
        %v1096 = vadd.f32 %v1082, %v1095
        %v1097 = vpop.f32.mrf.mxu0
        %v1098 = vadd.f32 %v1084, %v1097
        %1099 = vdwg.mxu0
        %1100 = vmatpush.bf16.msra.mxu0 %v975
        %1101 = vmatpush.bf16.msra.mxu0 %v973
        %1102 = vmatpush.bf16.msra.mxu0 %v971
        %1103 = vmatpush.bf16.msra.mxu0 %v969
        %1104 = vmatpush.bf16.msra.mxu0 %v967
        %1105 = vmatpush.bf16.msra.mxu0 %v965
        %1106 = vmatpush.bf16.msra.mxu0 %v963
        %1107 = vmatpush.bf16.msra.mxu0 %v961
        %1108 = vmatmul.bf16.gmra.mxu0 %v1010
        %v1109 = vpop.f32.mrf.mxu0
        %v1110 = vadd.f32 %v1096, %v1109
        %v1111 = vpop.f32.mrf.mxu0
        %v1112 = vadd.f32 %v1098, %v1111
        %1113 = vdwg.mxu0
        %1114 = vmatpush.bf16.msra.mxu0 %v991
        %1115 = vmatpush.bf16.msra.mxu0 %v989
        %1116 = vmatpush.bf16.msra.mxu0 %v987
        %1117 = vmatpush.bf16.msra.mxu0 %v985
        %1118 = vmatpush.bf16.msra.mxu0 %v983
        %1119 = vmatpush.bf16.msra.mxu0 %v981
        %1120 = vmatpush.bf16.msra.mxu0 %v979
        %1121 = vmatpush.bf16.msra.mxu0 %v977
        %1122 = vmatmul.bf16.gmra.mxu0 %v1011
        %v1123 = vpop.f32.mrf.mxu0
        %v1124 = vadd.f32 %v1110, %v1123
        %v1125 = vpop.f32.mrf.mxu0
        %v1126 = vadd.f32 %v1112, %v1125
        %1127 = vdwg.mxu0
        %v1128 = vld [vmem:[%s253] sm:$0xff]
        %v1129 = vld [vmem:[%s253 + $0x8] sm:$0xff]
        %v1130 = vadd.f32 %v1128, %v1068
        %v1131 = vadd.f32 %v1129, %v1124
        %1132 = vst [vmem:[%s253] sm:$0xff] %v1130
        %1133 = vst [vmem:[%s253 + $0x8] sm:$0xff] %v1131
        %v1134 = vld [vmem:[%s260] sm:$0x3]
        %v1137 = vrot.slane %v1126, 7
        %vm1138 = vcmask 1040384
        %v1139 = vsel %vm1138, %v1070, %v1137
        %v1141 = vadd.f32 %v1134, %v1139
        %v1142 = vlaneseq
        %vm1143 = vcmp.ge.s32.totalorder %v1142, 0
        %vm1144 = vcmp.lt.s32.totalorder %v1142, 256
        %vm1145 = vmand %vm1143, %vm1144
        %1146 = vst.msk [vmem:[%s260] sm:$0x3] %vm1145, %v1141
        %p1147 = scmp.eq.s32.totalorder %s27, 1
        // Predicated region
        $region60: #{to_bev_convolution.3} parent=50 // pred_check
          %p1148 = pneg %p1147
        $region61: #{to_bev_convolution.3} parent=50 // pred_check_branch
          %1150 = sbr.rel (%p1148) target = $region63
        $region62: #{to_bev_convolution.3} parent=50 // pred_region
          %v1151 = vld [vmem:[%s253] sm:$0xff]
          %v1152 = vld [vmem:[%s253 + $0x8] sm:$0xff]
          %v1153 = vld [vmem:[%s260] sm:$0x3]
          %v1154 = vld [vmem:[%s2] sm:$0xff]
          %v1156 = vperm.slane %v1153, 0
          %v1157 = vperm.slane %v1153, 1
          %1161 = vset.pattern.permute.xlu0 0
          %1162 = vperm.xlu0 %1161, %v1154
          %v1163 = vpop.permute.xlu0 %1162
          %v1165 = vmul.f32 %v1156, %v1163
          %v1166 = vmul.f32 %v1157, %v1163
          %v1167 = vadd.f32 %v1151, %v1165
          %v1168 = vadd.f32 %v1152, %v1166
          %1169 = vst [vmem:[%s253] sm:$0xff] %v1167
          %1170 = vst [vmem:[%s253 + $0x8] sm:$0xff] %v1168
        $region63: #{to_bev_convolution.3} parent=50 // pred_fallthru
          _
        %s1171 = sand.u32 %s115, 1
        %s1172 = scalar_lea.sflag [#allocation4], %s1171
        %s1173 = sand.u32 %s115, 1
        %s1174 = smul.addr %s1173, 16
        %s1175 = scalar_lea.vmem [#allocation3], %s1174
        %s1176 = sand.u32 %s141, 1
        %s1177 = scalar_lea.sflag [#allocation6], %s1176
        %s1178 = sand.u32 %s141, 1
        %s1179 = smul.addr %s1178, 2
        %s1180 = scalar_lea.vmem [#allocation5], %s1179
        // Predicated region
        $region64: #{to_bev_convolution.3} parent=50 // pred_check
          %p1181 = pneg %p125
        $region65: #{to_bev_convolution.3} parent=50 // pred_check_branch
          %1183 = sbr.rel (%p1181) target = $region67
        $region66: #{to_bev_convolution.3} parent=50 // pred_region
          %s1184 = smul.u32 2, %s26
          %1186 = vsyncadd %s1172, 0
          %s1187 = smul.addr %s1184, 8
          %s1188 = scalar_lea.hbm %s3, %s1187
          %s1190 = sshll.u32 %s1175, 4
          %s1191 = int_to_ptr.vmem [resolvable:$true] %s1190
          %s1192 = sshll.u32 %s1188, 4
          %s1193 = int_to_ptr.hbm [resolvable:$true] %s1192
          %1195 = dma.vmem_to_hbm [thread:$0]  %s1191, 256, %s1193, %s1172
        $region67: #{to_bev_convolution.3} parent=50 // pred_fallthru
          _
        // Predicated region
        $region68: #{to_bev_convolution.3} parent=50 // pred_check
          %p1196 = pneg %p151
        $region69: #{to_bev_convolution.3} parent=50 // pred_check_branch
          %1198 = sbr.rel (%p1196) target = $region71
        $region70: #{to_bev_convolution.3} parent=50 // pred_region
          %s1199 = smul.u32 2, %s26
          %1201 = vsyncadd %s1177, 0
          %s1202 = scalar_lea.hbm %s4, %s1199
          %s1204 = sshll.u32 %s1180, 4
          %s1205 = int_to_ptr.vmem [resolvable:$true] %s1204
          %s1206 = sshll.u32 %s1202, 4
          %s1207 = int_to_ptr.hbm [resolvable:$true] %s1206
          %1209 = dma.vmem_to_hbm [thread:$0]  %s1205, 32, %s1207, %s1177
        $region71: #{to_bev_convolution.3} parent=50 // pred_fallthru
          _
      $region51: #{to_bev_convolution.3} parent=5 // pred_fallthru
        _
      %p1210 = scmp.le.s32.totalorder 2, %s17
      // Predicated region
      $region72: #{to_bev_convolution.3} parent=5 // pred_check
        %p1211 = pneg %p1210
      $region73: #{to_bev_convolution.3} parent=5 // pred_check_branch
        %1213 = sbr.rel (%p1211) target = $region75
      $region74: #{to_bev_convolution.3} parent=5 // pred_region
        %s1214 = ssub.s32 %s17, 2
        // Predicated region
        $region76: #{to_bev_convolution.3} parent=74 // pred_check
          %p1215 = pneg %p131
        $region77: #{to_bev_convolution.3} parent=74 // pred_check_branch
          %1217 = sbr.rel (%p1215) target = $region79
        $region78: #{to_bev_convolution.3} parent=74 // pred_region
          %s1218 = sand.u32 %s116, 1
          %s1219 = scalar_lea.sflag [#allocation4], %s1218
          %s1220 = sand.u32 %s116, 1
          %s1221 = smul.addr %s1220, 16
          %s1222 = scalar_lea.vmem [#allocation3], %s1221
          %1224 = dma.done %s1219, 256
        $region79: #{to_bev_convolution.3} parent=74 // pred_fallthru
          _
        // Predicated region
        $region80: #{to_bev_convolution.3} parent=74 // pred_check
          %p1225 = pneg %p157
        $region81: #{to_bev_convolution.3} parent=74 // pred_check_branch
          %1227 = sbr.rel (%p1225) target = $region83
        $region82: #{to_bev_convolution.3} parent=74 // pred_region
          %s1228 = sand.u32 %s142, 1
          %s1229 = scalar_lea.sflag [#allocation6], %s1228
          %s1230 = sand.u32 %s142, 1
          %s1231 = smul.addr %s1230, 2
          %s1232 = scalar_lea.vmem [#allocation5], %s1231
          %1234 = dma.done %s1229, 32
        $region83: #{to_bev_convolution.3} parent=74 // pred_fallthru
          _
      $region75: #{to_bev_convolution.3} parent=5 // pred_fallthru
        _
    $region6: #{to_bev_convolution.3} parent=1 // loop_footer
      %s21 = sadd.s32 1, %s17
    $region7: #{to_bev_convolution.3} parent=1 // loop_footer_branch
      %16 = sbr.rel target = $region3
    $region8: #{to_bev_convolution.3} parent=1 // loop_exit
      _
    %1235 = vsyncpa [#allocation4], 1
    %s1236 = scalar_lea.sflag [#allocation4], 1
    %1237 = vsyncpa %s1236, 1
    %1238 = vsyncpa [#allocation6], 1
    %s1239 = scalar_lea.sflag [#allocation6], 1
    %1240 = vsyncpa %s1239, 1

</llo_original>
